<compile_context>
chip_gen: v6e
topology: v6e:2x2x1
jax: 0.10.0
libtpu: 0.0.40
codegen_flags: <defaults>
</compile_context>

<pallas_src>
import functools
import math

import jax
import jax.numpy as jnp
from jax.experimental import pallas as pl
from jax.experimental.pallas import tpu as pltpu


def _pool_sum_kernel(x_ref, sum_ref, *, hw, hw_tile, need_mask):
    """Accumulate per-row (= per batch*channel) spatial sums.

    Grid: (row_tiles[parallel], hw_tiles[reduction, last]).
    """
    t = pl.program_id(1)

    @pl.when(t == 0)
    def _init():
        sum_ref[...] = jnp.zeros_like(sum_ref)

    x = x_ref[...].astype(jnp.float32)                        # (R, HW_TILE)
    if need_mask:
        # Only compiled in when hw_tile does not divide hw: zero out lanes past
        # the true spatial extent on the partial edge tile (keeps sums exact).
        lane = jax.lax.broadcasted_iota(jnp.int32, x.shape, 1)
        x = jnp.where(t * hw_tile + lane < hw, x, 0.0)
    sum_ref[...] += jnp.sum(x, axis=-1, keepdims=True)        # (R, 1) f32


def _scale_kernel(x_ref, g_ref, o_ref):
    """out = x * per-row gate, broadcast over the lane-dense HW tile."""
    x = x_ref[...].astype(jnp.float32)                        # (R, HW_TILE)
    o_ref[...] = (x * g_ref[...]).astype(o_ref.dtype)         # g_ref: (R, 1) f32


def _pick_tiles(rows, hw, itemsize, *, lane_cap=2048, block_bytes=2 * 1024 * 1024):
    """Lane-dense HW tile (full extent or multiple of 128) + sublane row tile."""
    if hw <= lane_cap:
        hw_tile = hw                                  # full-extent block: always legal
    else:
        hw_tile = lane_cap                            # multiple of 128
    max_rows = max(8, block_bytes // max(1, hw_tile * itemsize))
    if rows <= max_rows:
        row_tile = rows                               # full-extent block: always legal
    else:
        row_tile = max(8, (max_rows // 8) * 8)        # multiple of 8 sublanes
    return row_tile, hw_tile


def eca_kernel_size(channel, b=1, gamma=2):
    """Same formula as the PyTorch eca_block constructor."""
    k = int(abs((math.log(channel, 2) + b) / gamma))
    return k if k % 2 else k + 1


@jax.jit
def eca_forward(x, conv_w):
    """x: (N, C, H, W); conv_w: (k,) taps of nn.Conv1d(1, 1, k, bias=False)."""
    n, c, h, w = x.shape
    hw = h * w
    rows = n * c
    k = conv_w.shape[0]
    pad = (k - 1) // 2

    itemsize = jnp.dtype(x.dtype).itemsize
    row_tile, hw_tile = _pick_tiles(rows, hw, itemsize)
    n_row_tiles = pl.cdiv(rows, row_tile)
    n_hw_tiles = pl.cdiv(hw, hw_tile)

    x2 = x.reshape(rows, hw)                                   # free reshape, no copy

    # ---- Pass 1: per-row spatial sums (HW-tiled reduction, resident accumulator). ----
    sums = pl.pallas_call(
        functools.partial(
            _pool_sum_kernel, hw=hw, hw_tile=hw_tile, need_mask=(hw % hw_tile != 0)
        ),
        out_shape=jax.ShapeDtypeStruct((rows, 1), jnp.float32),
        grid_spec=pltpu.PrefetchScalarGridSpec(
            num_scalar_prefetch=0,
            grid=(n_row_tiles, n_hw_tiles),
            in_specs=[pl.BlockSpec((row_tile, hw_tile), lambda r, t: (r, t))],
            out_specs=pl.BlockSpec((row_tile, 1), lambda r, t: (r, 0)),
        ),
        compiler_params=pltpu.CompilerParams(
            dimension_semantics=("parallel", "arbitrary"),
            vmem_limit_bytes=32 * 1024 * 1024,
        ),
    )(x2)

    # ---- Tiny ECA channel conv + sigmoid: one batched XLA op (O(N*C*k) flops),
    # hoisted out of the HBM-bound Pallas passes. ----
    mean = sums.reshape(n, c) * (1.0 / float(hw))              # divide by TRUE HW
    mean_p = jnp.pad(mean, ((0, 0), (pad, pad))) if pad > 0 else mean
    y = jnp.zeros_like(mean)
    for j in range(k):                                         # k is tiny and static
        y = y + conv_w[j] * jax.lax.slice_in_dim(mean_p, j, j + c, axis=1)
    gate = jax.nn.sigmoid(y).reshape(rows, 1)                  # (N*C, 1) f32

    # ---- Pass 2: lane-dense per-row rescale (fully parallel grid). ----
    out2 = pl.pallas_call(
        _scale_kernel,
        out_shape=jax.ShapeDtypeStruct((rows, hw), x.dtype),
        grid_spec=pltpu.PrefetchScalarGridSpec(
            num_scalar_prefetch=0,
            grid=(n_row_tiles, n_hw_tiles),
            in_specs=[
                pl.BlockSpec((row_tile, hw_tile), lambda r, t: (r, t)),
                pl.BlockSpec((row_tile, 1), lambda r, t: (r, 0)),
            ],
            out_specs=pl.BlockSpec((row_tile, hw_tile), lambda r, t: (r, t)),
        ),
        compiler_params=pltpu.CompilerParams(
            dimension_semantics=("parallel", "parallel"),
            vmem_limit_bytes=32 * 1024 * 1024,
        ),
    )(x2, gate)

    return out2.reshape(n, c, h, w)


def eca_reference(x, conv_w):
    """Pure-JAX reference mirroring the PyTorch eca_block forward."""
    k = conv_w.shape[0]
    y = jnp.mean(x.astype(jnp.float32), axis=(2, 3))           # (N, C)
    y = jax.lax.conv_general_dilated(
        y[:, None, :],                                         # (N, 1, C)
        conv_w.reshape(1, 1, k).astype(jnp.float32),
        window_strides=(1,),
        padding=[((k - 1) // 2, (k - 1) // 2)],
        dimension_numbers=("NCH", "OIH", "NCH"),
        precision=jax.lax.Precision.HIGHEST,
    )[:, 0, :]                                                 # (N, C)
    gate = jax.nn.sigmoid(y)
    return x * gate[:, :, None, None].astype(x.dtype)


if __name__ == "__main__":
    key = jax.random.PRNGKey(0)
    kx, kw = jax.random.split(key)

    # C=32 -> kernel_size=3 (same formula as the PyTorch module); H=W=64 so the
    # HW axis spans two lane tiles and exercises the resident-accumulator path.
    N, C, H, W = 2, 32, 64, 64
    k = eca_kernel_size(C)

    x = jax.random.normal(kx, (N, C, H, W), dtype=jnp.float32)
    # Taps of nn.Conv1d(1, 1, k, bias=False).weight[0, 0] (deterministic synthetic init).
    conv_w = jax.random.normal(kw, (k,), dtype=jnp.float32) * 0.5

    out = jax.block_until_ready(eca_forward(x, conv_w))
    ref = eca_reference(x, conv_w)

    assert out.shape == (N, C, H, W)
    assert jnp.allclose(out, ref, atol=1e-5, rtol=1e-5), float(jnp.max(jnp.abs(out - ref)))

    print("KERNEL_OK")
</pallas_src>

<mosaic_0001>
module attributes {stable_mosaic.version = 11 : i64} {
  func.func @_pool_sum_kernel(%arg0: i32, %arg1: i32, %arg2: memref<64x2048xf32, #tpu.memory_space<vmem>>, %arg3: memref<64x1xf32, #tpu.memory_space<vmem>>) attributes {dimension_semantics = [#tpu.dimension_semantics<parallel>, #tpu.dimension_semantics<arbitrary>], iteration_bounds = array<i64: 1, 2>, scalar_prefetch = 0 : i64, scratch_operands = 0 : i64, tpu.core_type = #tpu.core_type<tc>, window_params = [{transform_indices = @transform_0, window_bounds = array<i64: 64, 2048>}, {transform_indices = @transform_1, window_bounds = array<i64: 64, 1>}]} {
    %c0_i32 = arith.constant 0 : i32
    %0 = arith.cmpi eq, %arg1, %c0_i32 : i32
    %1 = arith.extui %0 : i1 to i32
    %c0_i32_0 = arith.constant 0 : i32
    %2 = arith.cmpi ne, %1, %c0_i32_0 : i32
    scf.if %2 {
      %cst_6 = arith.constant 0.000000e+00 : f32
      %9 = vector.broadcast %cst_6 : f32 to vector<64x1xf32>
      %c0_7 = arith.constant 0 : index
      %c0_8 = arith.constant 0 : index
      %10 = vector.load %arg3[%c0_7, %c0_8] : memref<64x1xf32, #tpu.memory_space<vmem>>, vector<64x1xf32>
      tpu.vector_store %arg3[%c0_7, %c0_8], %9 {strides = array<i32>} : memref<64x1xf32, #tpu.memory_space<vmem>>, vector<64x1xf32>,
    } else {
    }
    %c0 = arith.constant 0 : index
    %c0_1 = arith.constant 0 : index
    %3 = vector.load %arg2[%c0, %c0_1] : memref<64x2048xf32, #tpu.memory_space<vmem>>, vector<64x2048xf32>
    %c0_2 = arith.constant 0 : index
    %c0_3 = arith.constant 0 : index
    %4 = vector.load %arg3[%c0_2, %c0_3] : memref<64x1xf32, #tpu.memory_space<vmem>>, vector<64x1xf32>
    %cst = arith.constant dense<0.000000e+00> : vector<64xf32>
    %5 = vector.multi_reduction <add>, %3, %cst [1] : vector<64x2048xf32> to vector<64xf32>
    %6 = vector.shape_cast %5 : vector<64xf32> to vector<64x1xf32>
    %7 = arith.addf %4, %6 : vector<64x1xf32>
    %c0_4 = arith.constant 0 : index
    %c0_5 = arith.constant 0 : index
    %8 = vector.load %arg3[%c0_4, %c0_5] : memref<64x1xf32, #tpu.memory_space<vmem>>, vector<64x1xf32>
    tpu.vector_store %arg3[%c0_4, %c0_5], %7 {strides = array<i32>} : memref<64x1xf32, #tpu.memory_space<vmem>>, vector<64x1xf32>,
    return
  }
  func.func @transform_0(%arg0: i32, %arg1: i32) -> (i32, i32) {
    %c0_i32 = arith.constant 0 : i32
    return %arg0, %arg1 : i32, i32
  }
  func.func @transform_1(%arg0: i32, %arg1: i32) -> (i32, i32) {
    %c0_i32 = arith.constant 0 : i32
    %c0_i32_0 = arith.constant 0 : i32
    return %arg0, %c0_i32 : i32, i32
  }
}

module attributes {stable_mosaic.version = 11 : i64} {
  func.func @_scale_kernel(%arg0: i32, %arg1: i32, %arg2: memref<64x2048xf32, #tpu.memory_space<vmem>>, %arg3: memref<64x1xf32, #tpu.memory_space<vmem>>, %arg4: memref<64x2048xf32, #tpu.memory_space<vmem>>) attributes {dimension_semantics = [#tpu.dimension_semantics<parallel>, #tpu.dimension_semantics<parallel>], iteration_bounds = array<i64: 1, 2>, scalar_prefetch = 0 : i64, scratch_operands = 0 : i64, tpu.core_type = #tpu.core_type<tc>, window_params = [{transform_indices = @transform_0, window_bounds = array<i64: 64, 2048>}, {transform_indices = @transform_1, window_bounds = array<i64: 64, 1>}, {transform_indices = @transform_2, window_bounds = array<i64: 64, 2048>}]} {
    %c0 = arith.constant 0 : index
    %c0_0 = arith.constant 0 : index
    %0 = vector.load %arg2[%c0, %c0_0] : memref<64x2048xf32, #tpu.memory_space<vmem>>, vector<64x2048xf32>
    %c0_1 = arith.constant 0 : index
    %c0_2 = arith.constant 0 : index
    %1 = vector.load %arg3[%c0_1, %c0_2] : memref<64x1xf32, #tpu.memory_space<vmem>>, vector<64x1xf32>
    %2 = vector.broadcast %1 : vector<64x1xf32> to vector<64x2048xf32>
    %3 = arith.mulf %0, %2 : vector<64x2048xf32>
    %c0_3 = arith.constant 0 : index
    %c0_4 = arith.constant 0 : index
    %4 = vector.load %arg4[%c0_3, %c0_4] : memref<64x2048xf32, #tpu.memory_space<vmem>>, vector<64x2048xf32>
    tpu.vector_store %arg4[%c0_3, %c0_4], %3 {strides = array<i32>} : memref<64x2048xf32, #tpu.memory_space<vmem>>, vector<64x2048xf32>,
    return
  }
  func.func @transform_0(%arg0: i32, %arg1: i32) -> (i32, i32) {
    %c0_i32 = arith.constant 0 : i32
    return %arg0, %arg1 : i32, i32
  }
  func.func @transform_1(%arg0: i32, %arg1: i32) -> (i32, i32) {
    %c0_i32 = arith.constant 0 : i32
    %c0_i32_0 = arith.constant 0 : i32
    return %arg0, %c0_i32 : i32, i32
  }
  func.func @transform_2(%arg0: i32, %arg1: i32) -> (i32, i32) {
    %c0_i32 = arith.constant 0 : i32
    return %arg0, %arg1 : i32, i32
  }
}

</mosaic_0001>

<llo_original>
// kernel: eca_forward.2
$region0: #{eca_forward.2}
  #allocation0 [shape = 'u32[]', space=smem, size = 0x4, offset = 0x4, fixed_abs, tag = 'smem constant byte address 0x4 - core index']
  #allocation1 [shape = 'u32[144,128]{1,0:T(1,128)}', space=vmem, size = 0x12000, scoped, tag = 'internal scratch']
  %s0 = inlined_call_operand.vmem [shape: f32[64,4096], index: 0, kind: input, shape index: {}]
  %s1 = inlined_call_operand.vmem [shape: f32[64,1], index: 1, kind: output, shape index: {}]
  %s2 = sld [smem:[#allocation0]]
  $region64: #{eca_forward.2} parent=0
    _
  %s4 = ssub.s32 1, %s2
  %s5 = scalar_select 0, %s4, %s2
  $region1: #{eca_forward.2} parent=0
    #allocation2 [shape = 'u8[1048576]{0}', space=vmem, size = 0x100000, scoped, tag = 'input window, operand 0']
    loop: start=0, step=1, limit=4
    $region2: #{eca_forward.2} parent=1 // loop_pre_header
      _
    $region3: #{eca_forward.2} parent=1 // loop_header
      %s7 = sphi 0, %s11
      %p8 = scmp.ge.s32.totalorder %s7, 4
      %s14 = sphi 0, %s26
      %s15 = sphi 0, %s22
      %s16 = sphi 0, %s14
      %s17 = sphi 0, %s15
      %s18 = sphi 0, %s16
      %s19 = sphi 0, %s17
      %s31 = sphi 0, %s33
      %s34 = sphi 0, %s31
      %s35 = sphi 0, %s34
      %s51 = sphi 0, %s35
      %s57 = sphi 0, %s59
      %s60 = sphi 0, %s57
      %s61 = sphi 0, %s60
      %s77 = sphi 0, %s61
    $region4: #{eca_forward.2} parent=1 // loop_header_branch
      %10 = sbr.rel (%p8) target = $region8
    $region5: #{eca_forward.2} parent=1 // loop_body
      %s12 = ssub.s32 %s7, 1
      %s13 = ssub.s32 %s7, 2
      %s20 = sadd.s32 1, %s15
      %p21 = scmp.ge.s32.totalorder %s20, 2
      %s22 = scalar_select %p21, 0, %s20
      %s23 = sadd.s32 1, %s14
      %s24 = scalar_select %p21, %s23, %s14
      %p25 = scmp.ge.s32.totalorder %s24, 1
      %s26 = scalar_select %p25, 0, %s24
      %s27 = ssub.s32 %s14, %s26
      %s28 = ssub.s32 %s15, %s22
      %s29 = sor.u32 %s27, %s28
      %p30 = scmp.eq.s32.totalorder %s29, 0
      %s32 = sadd.s32 %s31, 1
      %s33 = scalar_select %p30, %s31, %s32
      %p36 = pneg %p30
      %p37 = scmp.eq.s32.totalorder %s7, 1
      %p38 = por %p36, %p37
      %p39 = scmp.ne.s32.totalorder %s31, %s34
      %p40 = scmp.eq.s32.totalorder %s7, 0
      %p41 = por %p39, %p40
      %p42 = scmp.ne.s32.totalorder %s31, %s34
      %p43 = scmp.eq.s32.totalorder %s12, 1
      %p44 = por %p42, %p43
      %p45 = scmp.ne.s32.totalorder %s34, %s35
      %p46 = scmp.eq.s32.totalorder %s12, 0
      %p47 = por %p45, %p46
      %p48 = scmp.ne.s32.totalorder %s34, %s35
      %p49 = scmp.eq.s32.totalorder %s13, 1
      %p50 = por %p48, %p49
      %p52 = scmp.ne.s32.totalorder %s35, %s51
      %p53 = scmp.eq.s32.totalorder %s13, 0
      %p54 = por %p52, %p53
      %s55 = ssub.s32 %s14, %s26
      %p56 = scmp.eq.s32.totalorder %s55, 0
      %s58 = sadd.s32 %s57, 1
      %s59 = scalar_select %p56, %s57, %s58
      %p62 = pneg %p56
      %p63 = scmp.eq.s32.totalorder %s7, 1
      %p64 = por %p62, %p63
      %p65 = scmp.ne.s32.totalorder %s57, %s60
      %p66 = scmp.eq.s32.totalorder %s7, 0
      %p67 = por %p65, %p66
      %p68 = scmp.ne.s32.totalorder %s57, %s60
      %p69 = scmp.eq.s32.totalorder %s12, 1
      %p70 = por %p68, %p69
      %p71 = scmp.ne.s32.totalorder %s60, %s61
      %p72 = scmp.eq.s32.totalorder %s12, 0
      %p73 = por %p71, %p72
      %p74 = scmp.ne.s32.totalorder %s60, %s61
      %p75 = scmp.eq.s32.totalorder %s13, 1
      %p76 = por %p74, %p75
      %p78 = scmp.ne.s32.totalorder %s61, %s77
      %p79 = scmp.eq.s32.totalorder %s13, 0
      %p80 = por %p78, %p79
      %p81 = scmp.le.s32.totalorder 1, %s7
      %p82 = scmp.lt.s32.totalorder %s7, 3
      %p83 = pnand %p81, %p82
      %p84 = pneg %p83
      // Predicated region
      $region9: #{eca_forward.2} parent=5 // pred_check
        _
      $region10: #{eca_forward.2} parent=5 // pred_check_branch
        %86 = sbr.rel (%p83) target = $region12
      $region11: #{eca_forward.2} parent=5 // pred_region
        %s87 = ssub.s32 %s7, 1
      $region12: #{eca_forward.2} parent=5 // pred_fallthru
        _
      %p88 = scmp.lt.s32.totalorder %s7, 2
      // Predicated region
      $region13: #{eca_forward.2} parent=5 // pred_check
        %p89 = pneg %p88
      $region14: #{eca_forward.2} parent=5 // pred_check_branch
        %91 = sbr.rel (%p89) target = $region16
      $region15: #{eca_forward.2} parent=5 // pred_region
        // Predicated region
        $region17: #{eca_forward.2} parent=15 // pred_check
          %p92 = pneg %p41
        $region18: #{eca_forward.2} parent=15 // pred_check_branch
          %94 = sbr.rel (%p92) target = $region20
        $region19: #{eca_forward.2} parent=15 // pred_region
          %s95 = sand.u32 %s31, 1
          %s96 = sand.u32 %s31, 1
          %s97 = smul.addr %s96, 1024
          %s98 = scalar_lea.vmem [#allocation2], %s97
          %s99 = smul.u32 8, %s14
          %s100 = smul.u32 16, %s15
          %s101 = smul.addr %s99, 32
          %s102 = sadd.s32 %s100, %s101
          %s103 = smul.addr %s102, 8
          %s104 = scalar_lea.vmem %s0, %s103
          // Predicated region
          $region21: #{eca_forward.2} parent=19 // pred_check
            _
          $region22: #{eca_forward.2} parent=19 // pred_check_branch
            %106 = sbr.rel (0) target = $region24
          $region23: #{eca_forward.2} parent=19 // pred_region
            // Predicated region
            $region25: #{eca_forward.2} parent=23 // pred_check
              _
            $region26: #{eca_forward.2} parent=23 // pred_check_branch
              %108 = sbr.rel (0) target = $region28
            $region27: #{eca_forward.2} parent=23 // pred_region
              loop: start=0, step=1, limit=1
              $region29: #{eca_forward.2} parent=27 // loop_pre_header
                _
              $region30: #{eca_forward.2} parent=27 // loop_header
                %s110 = sphi 0, %s114
                %p111 = scmp.ge.s32.totalorder %s110, 1
                %s115 = sphi %s104, %s104
                %s116 = sphi %s98, %s98
              $region31: #{eca_forward.2} parent=27 // loop_header_branch
                %113 = sbr.rel (%p111) target = $region35
              $region32: #{eca_forward.2} parent=27 // loop_body
                %v117 = vld [vmem:[%s115] sm:$0xff]
                %118 = vst [vmem:[%s116] sm:$0xff] %v117
                %v119 = vld [vmem:[%s115 + $0x8] sm:$0xff]
                %120 = vst [vmem:[%s116 + $0x8] sm:$0xff] %v119
                %v121 = vld [vmem:[%s115 + $0x10] sm:$0xff]
                %122 = vst [vmem:[%s116 + $0x10] sm:$0xff] %v121
                %v123 = vld [vmem:[%s115 + $0x18] sm:$0xff]
                %124 = vst [vmem:[%s116 + $0x18] sm:$0xff] %v123
                %v125 = vld [vmem:[%s115 + $0x20] sm:$0xff]
                %126 = vst [vmem:[%s116 + $0x20] sm:$0xff] %v125
                %v127 = vld [vmem:[%s115 + $0x28] sm:$0xff]
                %128 = vst [vmem:[%s116 + $0x28] sm:$0xff] %v127
                %v129 = vld [vmem:[%s115 + $0x30] sm:$0xff]
                %130 = vst [vmem:[%s116 + $0x30] sm:$0xff] %v129
                %v131 = vld [vmem:[%s115 + $0x38] sm:$0xff]
                %132 = vst [vmem:[%s116 + $0x38] sm:$0xff] %v131
                %v133 = vld [vmem:[%s115 + $0x40] sm:$0xff]
                %134 = vst [vmem:[%s116 + $0x40] sm:$0xff] %v133
                %v135 = vld [vmem:[%s115 + $0x48] sm:$0xff]
                %136 = vst [vmem:[%s116 + $0x48] sm:$0xff] %v135
                %v137 = vld [vmem:[%s115 + $0x50] sm:$0xff]
                %138 = vst [vmem:[%s116 + $0x50] sm:$0xff] %v137
                %v139 = vld [vmem:[%s115 + $0x58] sm:$0xff]
                %140 = vst [vmem:[%s116 + $0x58] sm:$0xff] %v139
                %v141 = vld [vmem:[%s115 + $0x60] sm:$0xff]
                %142 = vst [vmem:[%s116 + $0x60] sm:$0xff] %v141
                %v143 = vld [vmem:[%s115 + $0x68] sm:$0xff]
                %144 = vst [vmem:[%s116 + $0x68] sm:$0xff] %v143
                %v145 = vld [vmem:[%s115 + $0x70] sm:$0xff]
                %146 = vst [vmem:[%s116 + $0x70] sm:$0xff] %v145
                %v147 = vld [vmem:[%s115 + $0x78] sm:$0xff]
                %148 = vst [vmem:[%s116 + $0x78] sm:$0xff] %v147
                %v149 = vld [vmem:[%s115 + $0x100] sm:$0xff]
                %150 = vst [vmem:[%s116 + $0x80] sm:$0xff] %v149
                %v151 = vld [vmem:[%s115 + $0x108] sm:$0xff]
                %152 = vst [vmem:[%s116 + $0x88] sm:$0xff] %v151
                %v153 = vld [vmem:[%s115 + $0x110] sm:$0xff]
                %154 = vst [vmem:[%s116 + $0x90] sm:$0xff] %v153
                %v155 = vld [vmem:[%s115 + $0x118] sm:$0xff]
                %156 = vst [vmem:[%s116 + $0x98] sm:$0xff] %v155
                %v157 = vld [vmem:[%s115 + $0x120] sm:$0xff]
                %158 = vst [vmem:[%s116 + $0xa0] sm:$0xff] %v157
                %v159 = vld [vmem:[%s115 + $0x128] sm:$0xff]
                %160 = vst [vmem:[%s116 + $0xa8] sm:$0xff] %v159
                %v161 = vld [vmem:[%s115 + $0x130] sm:$0xff]
                %162 = vst [vmem:[%s116 + $0xb0] sm:$0xff] %v161
                %v163 = vld [vmem:[%s115 + $0x138] sm:$0xff]
                %164 = vst [vmem:[%s116 + $0xb8] sm:$0xff] %v163
                %v165 = vld [vmem:[%s115 + $0x140] sm:$0xff]
                %166 = vst [vmem:[%s116 + $0xc0] sm:$0xff] %v165
                %v167 = vld [vmem:[%s115 + $0x148] sm:$0xff]
                %168 = vst [vmem:[%s116 + $0xc8] sm:$0xff] %v167
                %v169 = vld [vmem:[%s115 + $0x150] sm:$0xff]
                %170 = vst [vmem:[%s116 + $0xd0] sm:$0xff] %v169
                %v171 = vld [vmem:[%s115 + $0x158] sm:$0xff]
                %172 = vst [vmem:[%s116 + $0xd8] sm:$0xff] %v171
                %v173 = vld [vmem:[%s115 + $0x160] sm:$0xff]
                %174 = vst [vmem:[%s116 + $0xe0] sm:$0xff] %v173
                %v175 = vld [vmem:[%s115 + $0x168] sm:$0xff]
                %176 = vst [vmem:[%s116 + $0xe8] sm:$0xff] %v175
                %v177 = vld [vmem:[%s115 + $0x170] sm:$0xff]
                %178 = vst [vmem:[%s116 + $0xf0] sm:$0xff] %v177
                %v179 = vld [vmem:[%s115 + $0x178] sm:$0xff]
                %180 = vst [vmem:[%s116 + $0xf8] sm:$0xff] %v179
                %v181 = vld [vmem:[%s115 + $0x200] sm:$0xff]
                %182 = vst [vmem:[%s116 + $0x100] sm:$0xff] %v181
                %v183 = vld [vmem:[%s115 + $0x208] sm:$0xff]
                %184 = vst [vmem:[%s116 + $0x108] sm:$0xff] %v183
                %v185 = vld [vmem:[%s115 + $0x210] sm:$0xff]
                %186 = vst [vmem:[%s116 + $0x110] sm:$0xff] %v185
                %v187 = vld [vmem:[%s115 + $0x218] sm:$0xff]
                %188 = vst [vmem:[%s116 + $0x118] sm:$0xff] %v187
                %v189 = vld [vmem:[%s115 + $0x220] sm:$0xff]
                %190 = vst [vmem:[%s116 + $0x120] sm:$0xff] %v189
                %v191 = vld [vmem:[%s115 + $0x228] sm:$0xff]
                %192 = vst [vmem:[%s116 + $0x128] sm:$0xff] %v191
                %v193 = vld [vmem:[%s115 + $0x230] sm:$0xff]
                %194 = vst [vmem:[%s116 + $0x130] sm:$0xff] %v193
                %v195 = vld [vmem:[%s115 + $0x238] sm:$0xff]
                %196 = vst [vmem:[%s116 + $0x138] sm:$0xff] %v195
                %v197 = vld [vmem:[%s115 + $0x240] sm:$0xff]
                %198 = vst [vmem:[%s116 + $0x140] sm:$0xff] %v197
                %v199 = vld [vmem:[%s115 + $0x248] sm:$0xff]
                %200 = vst [vmem:[%s116 + $0x148] sm:$0xff] %v199
                %v201 = vld [vmem:[%s115 + $0x250] sm:$0xff]
                %202 = vst [vmem:[%s116 + $0x150] sm:$0xff] %v201
                %v203 = vld [vmem:[%s115 + $0x258] sm:$0xff]
                %204 = vst [vmem:[%s116 + $0x158] sm:$0xff] %v203
                %v205 = vld [vmem:[%s115 + $0x260] sm:$0xff]
                %206 = vst [vmem:[%s116 + $0x160] sm:$0xff] %v205
                %v207 = vld [vmem:[%s115 + $0x268] sm:$0xff]
                %208 = vst [vmem:[%s116 + $0x168] sm:$0xff] %v207
                %v209 = vld [vmem:[%s115 + $0x270] sm:$0xff]
                %210 = vst [vmem:[%s116 + $0x170] sm:$0xff] %v209
                %v211 = vld [vmem:[%s115 + $0x278] sm:$0xff]
                %212 = vst [vmem:[%s116 + $0x178] sm:$0xff] %v211
                %v213 = vld [vmem:[%s115 + $0x300] sm:$0xff]
                %214 = vst [vmem:[%s116 + $0x180] sm:$0xff] %v213
                %v215 = vld [vmem:[%s115 + $0x308] sm:$0xff]
                %216 = vst [vmem:[%s116 + $0x188] sm:$0xff] %v215
                %v217 = vld [vmem:[%s115 + $0x310] sm:$0xff]
                %218 = vst [vmem:[%s116 + $0x190] sm:$0xff] %v217
                %v219 = vld [vmem:[%s115 + $0x318] sm:$0xff]
                %220 = vst [vmem:[%s116 + $0x198] sm:$0xff] %v219
                %v221 = vld [vmem:[%s115 + $0x320] sm:$0xff]
                %222 = vst [vmem:[%s116 + $0x1a0] sm:$0xff] %v221
                %v223 = vld [vmem:[%s115 + $0x328] sm:$0xff]
                %224 = vst [vmem:[%s116 + $0x1a8] sm:$0xff] %v223
                %v225 = vld [vmem:[%s115 + $0x330] sm:$0xff]
                %226 = vst [vmem:[%s116 + $0x1b0] sm:$0xff] %v225
                %v227 = vld [vmem:[%s115 + $0x338] sm:$0xff]
                %228 = vst [vmem:[%s116 + $0x1b8] sm:$0xff] %v227
                %v229 = vld [vmem:[%s115 + $0x340] sm:$0xff]
                %230 = vst [vmem:[%s116 + $0x1c0] sm:$0xff] %v229
                %v231 = vld [vmem:[%s115 + $0x348] sm:$0xff]
                %232 = vst [vmem:[%s116 + $0x1c8] sm:$0xff] %v231
                %v233 = vld [vmem:[%s115 + $0x350] sm:$0xff]
                %234 = vst [vmem:[%s116 + $0x1d0] sm:$0xff] %v233
                %v235 = vld [vmem:[%s115 + $0x358] sm:$0xff]
                %236 = vst [vmem:[%s116 + $0x1d8] sm:$0xff] %v235
                %v237 = vld [vmem:[%s115 + $0x360] sm:$0xff]
                %238 = vst [vmem:[%s116 + $0x1e0] sm:$0xff] %v237
                %v239 = vld [vmem:[%s115 + $0x368] sm:$0xff]
                %240 = vst [vmem:[%s116 + $0x1e8] sm:$0xff] %v239
                %v241 = vld [vmem:[%s115 + $0x370] sm:$0xff]
                %242 = vst [vmem:[%s116 + $0x1f0] sm:$0xff] %v241
                %v243 = vld [vmem:[%s115 + $0x378] sm:$0xff]
                %244 = vst [vmem:[%s116 + $0x1f8] sm:$0xff] %v243
                %v245 = vld [vmem:[%s115 + $0x400] sm:$0xff]
                %246 = vst [vmem:[%s116 + $0x200] sm:$0xff] %v245
                %v247 = vld [vmem:[%s115 + $0x408] sm:$0xff]
                %248 = vst [vmem:[%s116 + $0x208] sm:$0xff] %v247
                %v249 = vld [vmem:[%s115 + $0x410] sm:$0xff]
                %250 = vst [vmem:[%s116 + $0x210] sm:$0xff] %v249
                %v251 = vld [vmem:[%s115 + $0x418] sm:$0xff]
                %252 = vst [vmem:[%s116 + $0x218] sm:$0xff] %v251
                %v253 = vld [vmem:[%s115 + $0x420] sm:$0xff]
                %254 = vst [vmem:[%s116 + $0x220] sm:$0xff] %v253
                %v255 = vld [vmem:[%s115 + $0x428] sm:$0xff]
                %256 = vst [vmem:[%s116 + $0x228] sm:$0xff] %v255
                %v257 = vld [vmem:[%s115 + $0x430] sm:$0xff]
                %258 = vst [vmem:[%s116 + $0x230] sm:$0xff] %v257
                %v259 = vld [vmem:[%s115 + $0x438] sm:$0xff]
                %260 = vst [vmem:[%s116 + $0x238] sm:$0xff] %v259
                %v261 = vld [vmem:[%s115 + $0x440] sm:$0xff]
                %262 = vst [vmem:[%s116 + $0x240] sm:$0xff] %v261
                %v263 = vld [vmem:[%s115 + $0x448] sm:$0xff]
                %264 = vst [vmem:[%s116 + $0x248] sm:$0xff] %v263
                %v265 = vld [vmem:[%s115 + $0x450] sm:$0xff]
                %266 = vst [vmem:[%s116 + $0x250] sm:$0xff] %v265
                %v267 = vld [vmem:[%s115 + $0x458] sm:$0xff]
                %268 = vst [vmem:[%s116 + $0x258] sm:$0xff] %v267
                %v269 = vld [vmem:[%s115 + $0x460] sm:$0xff]
                %270 = vst [vmem:[%s116 + $0x260] sm:$0xff] %v269
                %v271 = vld [vmem:[%s115 + $0x468] sm:$0xff]
                %272 = vst [vmem:[%s116 + $0x268] sm:$0xff] %v271
                %v273 = vld [vmem:[%s115 + $0x470] sm:$0xff]
                %274 = vst [vmem:[%s116 + $0x270] sm:$0xff] %v273
                %v275 = vld [vmem:[%s115 + $0x478] sm:$0xff]
                %276 = vst [vmem:[%s116 + $0x278] sm:$0xff] %v275
                %v277 = vld [vmem:[%s115 + $0x500] sm:$0xff]
                %278 = vst [vmem:[%s116 + $0x280] sm:$0xff] %v277
                %v279 = vld [vmem:[%s115 + $0x508] sm:$0xff]
                %280 = vst [vmem:[%s116 + $0x288] sm:$0xff] %v279
                %v281 = vld [vmem:[%s115 + $0x510] sm:$0xff]
                %282 = vst [vmem:[%s116 + $0x290] sm:$0xff] %v281
                %v283 = vld [vmem:[%s115 + $0x518] sm:$0xff]
                %284 = vst [vmem:[%s116 + $0x298] sm:$0xff] %v283
                %v285 = vld [vmem:[%s115 + $0x520] sm:$0xff]
                %286 = vst [vmem:[%s116 + $0x2a0] sm:$0xff] %v285
                %v287 = vld [vmem:[%s115 + $0x528] sm:$0xff]
                %288 = vst [vmem:[%s116 + $0x2a8] sm:$0xff] %v287
                %v289 = vld [vmem:[%s115 + $0x530] sm:$0xff]
                %290 = vst [vmem:[%s116 + $0x2b0] sm:$0xff] %v289
                %v291 = vld [vmem:[%s115 + $0x538] sm:$0xff]
                %292 = vst [vmem:[%s116 + $0x2b8] sm:$0xff] %v291
                %v293 = vld [vmem:[%s115 + $0x540] sm:$0xff]
                %294 = vst [vmem:[%s116 + $0x2c0] sm:$0xff] %v293
                %v295 = vld [vmem:[%s115 + $0x548] sm:$0xff]
                %296 = vst [vmem:[%s116 + $0x2c8] sm:$0xff] %v295
                %v297 = vld [vmem:[%s115 + $0x550] sm:$0xff]
                %298 = vst [vmem:[%s116 + $0x2d0] sm:$0xff] %v297
                %v299 = vld [vmem:[%s115 + $0x558] sm:$0xff]
                %300 = vst [vmem:[%s116 + $0x2d8] sm:$0xff] %v299
                %v301 = vld [vmem:[%s115 + $0x560] sm:$0xff]
                %302 = vst [vmem:[%s116 + $0x2e0] sm:$0xff] %v301
                %v303 = vld [vmem:[%s115 + $0x568] sm:$0xff]
                %304 = vst [vmem:[%s116 + $0x2e8] sm:$0xff] %v303
                %v305 = vld [vmem:[%s115 + $0x570] sm:$0xff]
                %306 = vst [vmem:[%s116 + $0x2f0] sm:$0xff] %v305
                %v307 = vld [vmem:[%s115 + $0x578] sm:$0xff]
                %308 = vst [vmem:[%s116 + $0x2f8] sm:$0xff] %v307
                %v309 = vld [vmem:[%s115 + $0x600] sm:$0xff]
                %310 = vst [vmem:[%s116 + $0x300] sm:$0xff] %v309
                %v311 = vld [vmem:[%s115 + $0x608] sm:$0xff]
                %312 = vst [vmem:[%s116 + $0x308] sm:$0xff] %v311
                %v313 = vld [vmem:[%s115 + $0x610] sm:$0xff]
                %314 = vst [vmem:[%s116 + $0x310] sm:$0xff] %v313
                %v315 = vld [vmem:[%s115 + $0x618] sm:$0xff]
                %316 = vst [vmem:[%s116 + $0x318] sm:$0xff] %v315
                %v317 = vld [vmem:[%s115 + $0x620] sm:$0xff]
                %318 = vst [vmem:[%s116 + $0x320] sm:$0xff] %v317
                %v319 = vld [vmem:[%s115 + $0x628] sm:$0xff]
                %320 = vst [vmem:[%s116 + $0x328] sm:$0xff] %v319
                %v321 = vld [vmem:[%s115 + $0x630] sm:$0xff]
                %322 = vst [vmem:[%s116 + $0x330] sm:$0xff] %v321
                %v323 = vld [vmem:[%s115 + $0x638] sm:$0xff]
                %324 = vst [vmem:[%s116 + $0x338] sm:$0xff] %v323
                %v325 = vld [vmem:[%s115 + $0x640] sm:$0xff]
                %326 = vst [vmem:[%s116 + $0x340] sm:$0xff] %v325
                %v327 = vld [vmem:[%s115 + $0x648] sm:$0xff]
                %328 = vst [vmem:[%s116 + $0x348] sm:$0xff] %v327
                %v329 = vld [vmem:[%s115 + $0x650] sm:$0xff]
                %330 = vst [vmem:[%s116 + $0x350] sm:$0xff] %v329
                %v331 = vld [vmem:[%s115 + $0x658] sm:$0xff]
                %332 = vst [vmem:[%s116 + $0x358] sm:$0xff] %v331
                %v333 = vld [vmem:[%s115 + $0x660] sm:$0xff]
                %334 = vst [vmem:[%s116 + $0x360] sm:$0xff] %v333
                %v335 = vld [vmem:[%s115 + $0x668] sm:$0xff]
                %336 = vst [vmem:[%s116 + $0x368] sm:$0xff] %v335
                %v337 = vld [vmem:[%s115 + $0x670] sm:$0xff]
                %338 = vst [vmem:[%s116 + $0x370] sm:$0xff] %v337
                %v339 = vld [vmem:[%s115 + $0x678] sm:$0xff]
                %340 = vst [vmem:[%s116 + $0x378] sm:$0xff] %v339
                %v341 = vld [vmem:[%s115 + $0x700] sm:$0xff]
                %342 = vst [vmem:[%s116 + $0x380] sm:$0xff] %v341
                %v343 = vld [vmem:[%s115 + $0x708] sm:$0xff]
                %344 = vst [vmem:[%s116 + $0x388] sm:$0xff] %v343
                %v345 = vld [vmem:[%s115 + $0x710] sm:$0xff]
                %346 = vst [vmem:[%s116 + $0x390] sm:$0xff] %v345
                %v347 = vld [vmem:[%s115 + $0x718] sm:$0xff]
                %348 = vst [vmem:[%s116 + $0x398] sm:$0xff] %v347
                %v349 = vld [vmem:[%s115 + $0x720] sm:$0xff]
                %350 = vst [vmem:[%s116 + $0x3a0] sm:$0xff] %v349
                %v351 = vld [vmem:[%s115 + $0x728] sm:$0xff]
                %352 = vst [vmem:[%s116 + $0x3a8] sm:$0xff] %v351
                %v353 = vld [vmem:[%s115 + $0x730] sm:$0xff]
                %354 = vst [vmem:[%s116 + $0x3b0] sm:$0xff] %v353
                %v355 = vld [vmem:[%s115 + $0x738] sm:$0xff]
                %356 = vst [vmem:[%s116 + $0x3b8] sm:$0xff] %v355
                %v357 = vld [vmem:[%s115 + $0x740] sm:$0xff]
                %358 = vst [vmem:[%s116 + $0x3c0] sm:$0xff] %v357
                %v359 = vld [vmem:[%s115 + $0x748] sm:$0xff]
                %360 = vst [vmem:[%s116 + $0x3c8] sm:$0xff] %v359
                %v361 = vld [vmem:[%s115 + $0x750] sm:$0xff]
                %362 = vst [vmem:[%s116 + $0x3d0] sm:$0xff] %v361
                %v363 = vld [vmem:[%s115 + $0x758] sm:$0xff]
                %364 = vst [vmem:[%s116 + $0x3d8] sm:$0xff] %v363
                %v365 = vld [vmem:[%s115 + $0x760] sm:$0xff]
                %366 = vst [vmem:[%s116 + $0x3e0] sm:$0xff] %v365
                %v367 = vld [vmem:[%s115 + $0x768] sm:$0xff]
                %368 = vst [vmem:[%s116 + $0x3e8] sm:$0xff] %v367
                %v369 = vld [vmem:[%s115 + $0x770] sm:$0xff]
                %370 = vst [vmem:[%s116 + $0x3f0] sm:$0xff] %v369
                %v371 = vld [vmem:[%s115 + $0x778] sm:$0xff]
                %372 = vst [vmem:[%s116 + $0x3f8] sm:$0xff] %v371
              $region33: #{eca_forward.2} parent=27 // loop_footer
                %s114 = sadd.s32 1, %s110
              $region34: #{eca_forward.2} parent=27 // loop_footer_branch
                %109 = sbr.rel target = $region30
              $region35: #{eca_forward.2} parent=27 // loop_exit
                _
            $region28: #{eca_forward.2} parent=23 // pred_fallthru
              _
            // Predicated region
            $region36: #{eca_forward.2} parent=23 // pred_check
              _
            $region37: #{eca_forward.2} parent=23 // pred_check_branch
              %374 = sbr.rel target = $region39
            $region38: #{eca_forward.2} parent=23 // pred_region
              _
            $region39: #{eca_forward.2} parent=23 // pred_fallthru
              _
          $region24: #{eca_forward.2} parent=19 // pred_fallthru
            _
          %375 = vnop
        $region20: #{eca_forward.2} parent=15 // pred_fallthru
          _
      $region16: #{eca_forward.2} parent=5 // pred_fallthru
        _
      %p376 = scmp.le.s32.totalorder 1, %s7
      %p377 = scmp.lt.s32.totalorder %s7, 3
      %p378 = pnand %p376, %p377
      %p379 = pneg %p378
      // Predicated region
      $region40: #{eca_forward.2} parent=5 // pred_check
        _
      $region41: #{eca_forward.2} parent=5 // pred_check_branch
        %381 = sbr.rel (%p378) target = $region43
      $region42: #{eca_forward.2} parent=5 // pred_region
        %s382 = ssub.s32 %s7, 1
        %s383 = sand.u32 %s34, 1
        %s384 = sand.u32 %s34, 1
        %s385 = smul.addr %s384, 1024
        %s386 = scalar_lea.vmem [#allocation2], %s385
        // Predicated region
        $region44: #{eca_forward.2} parent=42 // pred_check
          %p387 = pneg %p47
        $region45: #{eca_forward.2} parent=42 // pred_check_branch
          %389 = sbr.rel (%p387) target = $region47
        $region46: #{eca_forward.2} parent=42 // pred_region
          _
        $region47: #{eca_forward.2} parent=42 // pred_fallthru
          _
        %s390 = sand.u32 %s34, 1
        %s391 = sand.u32 %s34, 1
        %s392 = smul.addr %s391, 1024
        %s393 = scalar_lea.vmem [#allocation2], %s392
        %p394 = pneg %p47
        %p395 = pneg %p44
        %p396 = pneg %p73
        %p397 = pneg %p70
        %s398 = smul.u32 8, %s16
        %p399 = scmp.lt.s32.totalorder %s398, 7
        %s400 = scalar_select %p399, %s398, 7
        %s401 = smul.addr %s400, 8
        %s402 = scalar_lea.vmem %s1, %s401
        %s403 = smul.u32 8, %s16
        %s404 = smul.u32 16, %s17
        %s405 = smul.u32 8, %s16
        %p406 = scmp.lt.s32.totalorder %s405, 7
        %s407 = scalar_select %p406, %s405, 7
        %s408 = smul.addr %s407, 8
        %s409 = scalar_lea.vmem %s1, %s408
        %s410 = smul.u32 8, %s16
        %p411 = scmp.eq.s32.totalorder %s17, 0
        // Predicated region
        $region48: #{eca_forward.2} parent=42 // pred_check
          %p412 = pneg %p411
        $region49: #{eca_forward.2} parent=42 // pred_check_branch
          %414 = sbr.rel (%p412) target = $region51
        $region50: #{eca_forward.2} parent=42 // pred_region
          %vm415 = vcmask 7168
          %416 = vst.msk [vmem:[%s409] sm:$0xff] %vm415, 0.0
          %417 = vst.msk [vmem:[%s409 + $0x8] sm:$0xff] %vm415, 0.0
          %418 = vst.msk [vmem:[%s409 + $0x10] sm:$0xff] %vm415, 0.0
          %419 = vst.msk [vmem:[%s409 + $0x18] sm:$0xff] %vm415, 0.0
          %420 = vst.msk [vmem:[%s409 + $0x20] sm:$0xff] %vm415, 0.0
          %421 = vst.msk [vmem:[%s409 + $0x28] sm:$0xff] %vm415, 0.0
          %422 = vst.msk [vmem:[%s409 + $0x30] sm:$0xff] %vm415, 0.0
          %423 = vst.msk [vmem:[%s409 + $0x38] sm:$0xff] %vm415, 0.0
        $region51: #{eca_forward.2} parent=42 // pred_fallthru
          _
        %v424 = vld [vmem:[%s386] sm:$0xff]
        %v425 = vld [vmem:[%s386 + $0x8] sm:$0xff]
        %v426 = vld [vmem:[%s386 + $0x10] sm:$0xff]
        %v427 = vld [vmem:[%s386 + $0x18] sm:$0xff]
        %v428 = vld [vmem:[%s386 + $0x20] sm:$0xff]
        %v429 = vld [vmem:[%s386 + $0x28] sm:$0xff]
        %v430 = vld [vmem:[%s386 + $0x30] sm:$0xff]
        %v431 = vld [vmem:[%s386 + $0x38] sm:$0xff]
        %v432 = vld [vmem:[%s386 + $0x40] sm:$0xff]
        %v433 = vld [vmem:[%s386 + $0x48] sm:$0xff]
        %v434 = vld [vmem:[%s386 + $0x50] sm:$0xff]
        %v435 = vld [vmem:[%s386 + $0x58] sm:$0xff]
        %v436 = vld [vmem:[%s386 + $0x60] sm:$0xff]
        %v437 = vld [vmem:[%s386 + $0x68] sm:$0xff]
        %v438 = vld [vmem:[%s386 + $0x70] sm:$0xff]
        %v439 = vld [vmem:[%s386 + $0x78] sm:$0xff]
        %v440 = vld [vmem:[%s386 + $0x80] sm:$0xff]
        %v441 = vld [vmem:[%s386 + $0x88] sm:$0xff]
        %v442 = vld [vmem:[%s386 + $0x90] sm:$0xff]
        %v443 = vld [vmem:[%s386 + $0x98] sm:$0xff]
        %v444 = vld [vmem:[%s386 + $0xa0] sm:$0xff]
        %v445 = vld [vmem:[%s386 + $0xa8] sm:$0xff]
        %v446 = vld [vmem:[%s386 + $0xb0] sm:$0xff]
        %v447 = vld [vmem:[%s386 + $0xb8] sm:$0xff]
        %v448 = vld [vmem:[%s386 + $0xc0] sm:$0xff]
        %v449 = vld [vmem:[%s386 + $0xc8] sm:$0xff]
        %v450 = vld [vmem:[%s386 + $0xd0] sm:$0xff]
        %v451 = vld [vmem:[%s386 + $0xd8] sm:$0xff]
        %v452 = vld [vmem:[%s386 + $0xe0] sm:$0xff]
        %v453 = vld [vmem:[%s386 + $0xe8] sm:$0xff]
        %v454 = vld [vmem:[%s386 + $0xf0] sm:$0xff]
        %v455 = vld [vmem:[%s386 + $0xf8] sm:$0xff]
        %v456 = vld [vmem:[%s386 + $0x100] sm:$0xff]
        %v457 = vld [vmem:[%s386 + $0x108] sm:$0xff]
        %v458 = vld [vmem:[%s386 + $0x110] sm:$0xff]
        %v459 = vld [vmem:[%s386 + $0x118] sm:$0xff]
        %v460 = vld [vmem:[%s386 + $0x120] sm:$0xff]
        %v461 = vld [vmem:[%s386 + $0x128] sm:$0xff]
        %v462 = vld [vmem:[%s386 + $0x130] sm:$0xff]
        %v463 = vld [vmem:[%s386 + $0x138] sm:$0xff]
        %v464 = vld [vmem:[%s386 + $0x140] sm:$0xff]
        %v465 = vld [vmem:[%s386 + $0x148] sm:$0xff]
        %v466 = vld [vmem:[%s386 + $0x150] sm:$0xff]
        %v467 = vld [vmem:[%s386 + $0x158] sm:$0xff]
        %v468 = vld [vmem:[%s386 + $0x160] sm:$0xff]
        %v469 = vld [vmem:[%s386 + $0x168] sm:$0xff]
        %v470 = vld [vmem:[%s386 + $0x170] sm:$0xff]
        %v471 = vld [vmem:[%s386 + $0x178] sm:$0xff]
        %v472 = vld [vmem:[%s386 + $0x180] sm:$0xff]
        %v473 = vld [vmem:[%s386 + $0x188] sm:$0xff]
        %v474 = vld [vmem:[%s386 + $0x190] sm:$0xff]
        %v475 = vld [vmem:[%s386 + $0x198] sm:$0xff]
        %v476 = vld [vmem:[%s386 + $0x1a0] sm:$0xff]
        %v477 = vld [vmem:[%s386 + $0x1a8] sm:$0xff]
        %v478 = vld [vmem:[%s386 + $0x1b0] sm:$0xff]
        %v479 = vld [vmem:[%s386 + $0x1b8] sm:$0xff]
        %v480 = vld [vmem:[%s386 + $0x1c0] sm:$0xff]
        %v481 = vld [vmem:[%s386 + $0x1c8] sm:$0xff]
        %v482 = vld [vmem:[%s386 + $0x1d0] sm:$0xff]
        %v483 = vld [vmem:[%s386 + $0x1d8] sm:$0xff]
        %v484 = vld [vmem:[%s386 + $0x1e0] sm:$0xff]
        %v485 = vld [vmem:[%s386 + $0x1e8] sm:$0xff]
        %v486 = vld [vmem:[%s386 + $0x1f0] sm:$0xff]
        %v487 = vld [vmem:[%s386 + $0x1f8] sm:$0xff]
        %v488 = vld [vmem:[%s386 + $0x200] sm:$0xff]
        %v489 = vld [vmem:[%s386 + $0x208] sm:$0xff]
        %v490 = vld [vmem:[%s386 + $0x210] sm:$0xff]
        %v491 = vld [vmem:[%s386 + $0x218] sm:$0xff]
        %v492 = vld [vmem:[%s386 + $0x220] sm:$0xff]
        %v493 = vld [vmem:[%s386 + $0x228] sm:$0xff]
        %v494 = vld [vmem:[%s386 + $0x230] sm:$0xff]
        %v495 = vld [vmem:[%s386 + $0x238] sm:$0xff]
        %v496 = vld [vmem:[%s386 + $0x240] sm:$0xff]
        %v497 = vld [vmem:[%s386 + $0x248] sm:$0xff]
        %v498 = vld [vmem:[%s386 + $0x250] sm:$0xff]
        %v499 = vld [vmem:[%s386 + $0x258] sm:$0xff]
        %v500 = vld [vmem:[%s386 + $0x260] sm:$0xff]
        %v501 = vld [vmem:[%s386 + $0x268] sm:$0xff]
        %v502 = vld [vmem:[%s386 + $0x270] sm:$0xff]
        %v503 = vld [vmem:[%s386 + $0x278] sm:$0xff]
        %v504 = vld [vmem:[%s386 + $0x280] sm:$0xff]
        %v505 = vld [vmem:[%s386 + $0x288] sm:$0xff]
        %v506 = vld [vmem:[%s386 + $0x290] sm:$0xff]
        %v507 = vld [vmem:[%s386 + $0x298] sm:$0xff]
        %v508 = vld [vmem:[%s386 + $0x2a0] sm:$0xff]
        %v509 = vld [vmem:[%s386 + $0x2a8] sm:$0xff]
        %v510 = vld [vmem:[%s386 + $0x2b0] sm:$0xff]
        %v511 = vld [vmem:[%s386 + $0x2b8] sm:$0xff]
        %v512 = vld [vmem:[%s386 + $0x2c0] sm:$0xff]
        %v513 = vld [vmem:[%s386 + $0x2c8] sm:$0xff]
        %v514 = vld [vmem:[%s386 + $0x2d0] sm:$0xff]
        %v515 = vld [vmem:[%s386 + $0x2d8] sm:$0xff]
        %v516 = vld [vmem:[%s386 + $0x2e0] sm:$0xff]
        %v517 = vld [vmem:[%s386 + $0x2e8] sm:$0xff]
        %v518 = vld [vmem:[%s386 + $0x2f0] sm:$0xff]
        %v519 = vld [vmem:[%s386 + $0x2f8] sm:$0xff]
        %v520 = vld [vmem:[%s386 + $0x300] sm:$0xff]
        %v521 = vld [vmem:[%s386 + $0x308] sm:$0xff]
        %v522 = vld [vmem:[%s386 + $0x310] sm:$0xff]
        %v523 = vld [vmem:[%s386 + $0x318] sm:$0xff]
        %v524 = vld [vmem:[%s386 + $0x320] sm:$0xff]
        %v525 = vld [vmem:[%s386 + $0x328] sm:$0xff]
        %v526 = vld [vmem:[%s386 + $0x330] sm:$0xff]
        %v527 = vld [vmem:[%s386 + $0x338] sm:$0xff]
        %v528 = vld [vmem:[%s386 + $0x340] sm:$0xff]
        %v529 = vld [vmem:[%s386 + $0x348] sm:$0xff]
        %v530 = vld [vmem:[%s386 + $0x350] sm:$0xff]
        %v531 = vld [vmem:[%s386 + $0x358] sm:$0xff]
        %v532 = vld [vmem:[%s386 + $0x360] sm:$0xff]
        %v533 = vld [vmem:[%s386 + $0x368] sm:$0xff]
        %v534 = vld [vmem:[%s386 + $0x370] sm:$0xff]
        %v535 = vld [vmem:[%s386 + $0x378] sm:$0xff]
        %v536 = vld [vmem:[%s386 + $0x380] sm:$0xff]
        %v537 = vld [vmem:[%s386 + $0x388] sm:$0xff]
        %v538 = vld [vmem:[%s386 + $0x390] sm:$0xff]
        %v539 = vld [vmem:[%s386 + $0x398] sm:$0xff]
        %v540 = vld [vmem:[%s386 + $0x3a0] sm:$0xff]
        %v541 = vld [vmem:[%s386 + $0x3a8] sm:$0xff]
        %v542 = vld [vmem:[%s386 + $0x3b0] sm:$0xff]
        %v543 = vld [vmem:[%s386 + $0x3b8] sm:$0xff]
        %v544 = vld [vmem:[%s386 + $0x3c0] sm:$0xff]
        %v545 = vld [vmem:[%s386 + $0x3c8] sm:$0xff]
        %v546 = vld [vmem:[%s386 + $0x3d0] sm:$0xff]
        %v547 = vld [vmem:[%s386 + $0x3d8] sm:$0xff]
        %v548 = vld [vmem:[%s386 + $0x3e0] sm:$0xff]
        %v549 = vld [vmem:[%s386 + $0x3e8] sm:$0xff]
        %v550 = vld [vmem:[%s386 + $0x3f0] sm:$0xff]
        %v551 = vld [vmem:[%s386 + $0x3f8] sm:$0xff]
        %v552 = vld [vmem:[%s409] sm:$0xff]
        %v553 = vld [vmem:[%s409 + $0x8] sm:$0xff]
        %v554 = vld [vmem:[%s409 + $0x10] sm:$0xff]
        %v555 = vld [vmem:[%s409 + $0x18] sm:$0xff]
        %v556 = vld [vmem:[%s409 + $0x20] sm:$0xff]
        %v557 = vld [vmem:[%s409 + $0x28] sm:$0xff]
        %v558 = vld [vmem:[%s409 + $0x30] sm:$0xff]
        %v559 = vld [vmem:[%s409 + $0x38] sm:$0xff]
        %v560 = vadd.f32 %v424, %v425
        %v561 = vadd.f32 %v560, %v426
        %v562 = vadd.f32 %v561, %v427
        %v563 = vadd.f32 %v562, %v428
        %v564 = vadd.f32 %v563, %v429
        %v565 = vadd.f32 %v564, %v430
        %v566 = vadd.f32 %v565, %v431
        %v567 = vadd.f32 %v566, %v432
        %v568 = vadd.f32 %v567, %v433
        %v569 = vadd.f32 %v568, %v434
        %v570 = vadd.f32 %v569, %v435
        %v571 = vadd.f32 %v570, %v436
        %v572 = vadd.f32 %v571, %v437
        %v573 = vadd.f32 %v572, %v438
        %v574 = vadd.f32 %v573, %v439
        %575 = vadd.xlane.f32.xlu0 %v574
        %v576 = vpop.xlane.xlu0 %575
        %v577 = vadd.f32 %v440, %v441
        %v578 = vadd.f32 %v577, %v442
        %v579 = vadd.f32 %v578, %v443
        %v580 = vadd.f32 %v579, %v444
        %v581 = vadd.f32 %v580, %v445
        %v582 = vadd.f32 %v581, %v446
        %v583 = vadd.f32 %v582, %v447
        %v584 = vadd.f32 %v583, %v448
        %v585 = vadd.f32 %v584, %v449
        %v586 = vadd.f32 %v585, %v450
        %v587 = vadd.f32 %v586, %v451
        %v588 = vadd.f32 %v587, %v452
        %v589 = vadd.f32 %v588, %v453
        %v590 = vadd.f32 %v589, %v454
        %v591 = vadd.f32 %v590, %v455
        %592 = vadd.xlane.f32.xlu0 %v591
        %v593 = vpop.xlane.xlu0 %592
        %v594 = vadd.f32 %v456, %v457
        %v595 = vadd.f32 %v594, %v458
        %v596 = vadd.f32 %v595, %v459
        %v597 = vadd.f32 %v596, %v460
        %v598 = vadd.f32 %v597, %v461
        %v599 = vadd.f32 %v598, %v462
        %v600 = vadd.f32 %v599, %v463
        %v601 = vadd.f32 %v600, %v464
        %v602 = vadd.f32 %v601, %v465
        %v603 = vadd.f32 %v602, %v466
        %v604 = vadd.f32 %v603, %v467
        %v605 = vadd.f32 %v604, %v468
        %v606 = vadd.f32 %v605, %v469
        %v607 = vadd.f32 %v606, %v470
        %v608 = vadd.f32 %v607, %v471
        %609 = vadd.xlane.f32.xlu0 %v608
        %v610 = vpop.xlane.xlu0 %609
        %v611 = vadd.f32 %v472, %v473
        %v612 = vadd.f32 %v611, %v474
        %v613 = vadd.f32 %v612, %v475
        %v614 = vadd.f32 %v613, %v476
        %v615 = vadd.f32 %v614, %v477
        %v616 = vadd.f32 %v615, %v478
        %v617 = vadd.f32 %v616, %v479
        %v618 = vadd.f32 %v617, %v480
        %v619 = vadd.f32 %v618, %v481
        %v620 = vadd.f32 %v619, %v482
        %v621 = vadd.f32 %v620, %v483
        %v622 = vadd.f32 %v621, %v484
        %v623 = vadd.f32 %v622, %v485
        %v624 = vadd.f32 %v623, %v486
        %v625 = vadd.f32 %v624, %v487
        %626 = vadd.xlane.f32.xlu0 %v625
        %v627 = vpop.xlane.xlu0 %626
        %v628 = vadd.f32 %v488, %v489
        %v629 = vadd.f32 %v628, %v490
        %v630 = vadd.f32 %v629, %v491
        %v631 = vadd.f32 %v630, %v492
        %v632 = vadd.f32 %v631, %v493
        %v633 = vadd.f32 %v632, %v494
        %v634 = vadd.f32 %v633, %v495
        %v635 = vadd.f32 %v634, %v496
        %v636 = vadd.f32 %v635, %v497
        %v637 = vadd.f32 %v636, %v498
        %v638 = vadd.f32 %v637, %v499
        %v639 = vadd.f32 %v638, %v500
        %v640 = vadd.f32 %v639, %v501
        %v641 = vadd.f32 %v640, %v502
        %v642 = vadd.f32 %v641, %v503
        %643 = vadd.xlane.f32.xlu0 %v642
        %v644 = vpop.xlane.xlu0 %643
        %v645 = vadd.f32 %v504, %v505
        %v646 = vadd.f32 %v645, %v506
        %v647 = vadd.f32 %v646, %v507
        %v648 = vadd.f32 %v647, %v508
        %v649 = vadd.f32 %v648, %v509
        %v650 = vadd.f32 %v649, %v510
        %v651 = vadd.f32 %v650, %v511
        %v652 = vadd.f32 %v651, %v512
        %v653 = vadd.f32 %v652, %v513
        %v654 = vadd.f32 %v653, %v514
        %v655 = vadd.f32 %v654, %v515
        %v656 = vadd.f32 %v655, %v516
        %v657 = vadd.f32 %v656, %v517
        %v658 = vadd.f32 %v657, %v518
        %v659 = vadd.f32 %v658, %v519
        %660 = vadd.xlane.f32.xlu0 %v659
        %v661 = vpop.xlane.xlu0 %660
        %v662 = vadd.f32 %v520, %v521
        %v663 = vadd.f32 %v662, %v522
        %v664 = vadd.f32 %v663, %v523
        %v665 = vadd.f32 %v664, %v524
        %v666 = vadd.f32 %v665, %v525
        %v667 = vadd.f32 %v666, %v526
        %v668 = vadd.f32 %v667, %v527
        %v669 = vadd.f32 %v668, %v528
        %v670 = vadd.f32 %v669, %v529
        %v671 = vadd.f32 %v670, %v530
        %v672 = vadd.f32 %v671, %v531
        %v673 = vadd.f32 %v672, %v532
        %v674 = vadd.f32 %v673, %v533
        %v675 = vadd.f32 %v674, %v534
        %v676 = vadd.f32 %v675, %v535
        %677 = vadd.xlane.f32.xlu0 %v676
        %v678 = vpop.xlane.xlu0 %677
        %v679 = vadd.f32 %v536, %v537
        %v680 = vadd.f32 %v679, %v538
        %v681 = vadd.f32 %v680, %v539
        %v682 = vadd.f32 %v681, %v540
        %v683 = vadd.f32 %v682, %v541
        %v684 = vadd.f32 %v683, %v542
        %v685 = vadd.f32 %v684, %v543
        %v686 = vadd.f32 %v685, %v544
        %v687 = vadd.f32 %v686, %v545
        %v688 = vadd.f32 %v687, %v546
        %v689 = vadd.f32 %v688, %v547
        %v690 = vadd.f32 %v689, %v548
        %v691 = vadd.f32 %v690, %v549
        %v692 = vadd.f32 %v691, %v550
        %v693 = vadd.f32 %v692, %v551
        %694 = vadd.xlane.f32.xlu0 %v693
        %v695 = vpop.xlane.xlu0 %694
        %v696 = vadd.f32 %v552, %v576
        %v697 = vadd.f32 %v553, %v593
        %v698 = vadd.f32 %v554, %v610
        %v699 = vadd.f32 %v555, %v627
        %v700 = vadd.f32 %v556, %v644
        %v701 = vadd.f32 %v557, %v661
        %v702 = vadd.f32 %v558, %v678
        %v703 = vadd.f32 %v559, %v695
        %vm704 = vcmask 7168
        %705 = vst.msk [vmem:[%s409] sm:$0xff] %vm704, %v696
        %706 = vst.msk [vmem:[%s409 + $0x8] sm:$0xff] %vm704, %v697
        %707 = vst.msk [vmem:[%s409 + $0x10] sm:$0xff] %vm704, %v698
        %708 = vst.msk [vmem:[%s409 + $0x18] sm:$0xff] %vm704, %v699
        %709 = vst.msk [vmem:[%s409 + $0x20] sm:$0xff] %vm704, %v700
        %710 = vst.msk [vmem:[%s409 + $0x28] sm:$0xff] %vm704, %v701
        %711 = vst.msk [vmem:[%s409 + $0x30] sm:$0xff] %vm704, %v702
        %712 = vst.msk [vmem:[%s409 + $0x38] sm:$0xff] %vm704, %v703
        %s713 = smul.u32 8, %s16
        %p714 = scmp.lt.s32.totalorder %s713, 7
        %s715 = scalar_select %p714, %s713, 7
        %s716 = smul.addr %s715, 8
        %s717 = scalar_lea.vmem %s1, %s716
        // Predicated region
        $region52: #{eca_forward.2} parent=42 // pred_check
          %p718 = pneg %p70
        $region53: #{eca_forward.2} parent=42 // pred_check_branch
          %720 = sbr.rel (%p718) target = $region55
        $region54: #{eca_forward.2} parent=42 // pred_region
          %s721 = smul.u32 8, %s16
        $region55: #{eca_forward.2} parent=42 // pred_fallthru
          _
        // Predicated region
        $region56: #{eca_forward.2} parent=42 // pred_check
          %p722 = pneg %p70
        $region57: #{eca_forward.2} parent=42 // pred_check_branch
          %724 = sbr.rel (%p722) target = $region59
        $region58: #{eca_forward.2} parent=42 // pred_region
          %s725 = smul.u32 8, %s16
          %p726 = scmp.lt.s32.totalorder %s725, 7
          %s727 = scalar_select %p726, %s725, 7
          %s728 = smul.addr %s727, 8
          %s729 = scalar_lea.vmem %s1, %s728
        $region59: #{eca_forward.2} parent=42 // pred_fallthru
          _
      $region43: #{eca_forward.2} parent=5 // pred_fallthru
        _
      %p730 = scmp.le.s32.totalorder 2, %s7
      // Predicated region
      $region60: #{eca_forward.2} parent=5 // pred_check
        %p731 = pneg %p730
      $region61: #{eca_forward.2} parent=5 // pred_check_branch
        %733 = sbr.rel (%p731) target = $region63
      $region62: #{eca_forward.2} parent=5 // pred_region
        %s734 = ssub.s32 %s7, 2
      $region63: #{eca_forward.2} parent=5 // pred_fallthru
        _
    $region6: #{eca_forward.2} parent=1 // loop_footer
      %s11 = sadd.s32 1, %s7
    $region7: #{eca_forward.2} parent=1 // loop_footer_branch
      %6 = sbr.rel target = $region3
    $region8: #{eca_forward.2} parent=1 // loop_exit
      _

// kernel: eca_forward.3
$region0: #{eca_forward.3}
  #allocation0 [shape = 'u32[]', space=smem, size = 0x4, offset = 0x4, fixed_abs, tag = 'smem constant byte address 0x4 - core index']
  #allocation1 [shape = 'u32[144,128]{1,0:T(1,128)}', space=vmem, size = 0x12000, scoped, tag = 'internal scratch']
  %s0 = inlined_call_operand.vmem [shape: f32[64,4096], index: 0, kind: input, shape index: {}]
  %s1 = inlined_call_operand.vmem [shape: f32[64,1], index: 1, kind: input, shape index: {}]
  %s2 = inlined_call_operand.vmem [shape: f32[64,4096], index: 2, kind: output, shape index: {}]
  %s3 = sld [smem:[#allocation0]]
  $region83: #{eca_forward.3} parent=0
    _
  %s5 = ssub.s32 1, %s3
  %s6 = scalar_select 0, %s5, %s3
  $region1: #{eca_forward.3} parent=0
    #allocation2 [shape = 'u8[1048576]{0}', space=vmem, size = 0x100000, scoped, tag = 'input window, operand 0']
    #allocation3 [shape = 'u8[1048576]{0}', space=vmem, size = 0x100000, scoped, tag = 'output window, operand 0']
    loop: start=0, step=1, limit=4
    $region2: #{eca_forward.3} parent=1 // loop_pre_header
      _
    $region3: #{eca_forward.3} parent=1 // loop_header
      %s8 = sphi 0, %s12
      %p9 = scmp.ge.s32.totalorder %s8, 4
      %s15 = sphi 0, %s27
      %s16 = sphi 0, %s23
      %s17 = sphi 0, %s15
      %s18 = sphi 0, %s16
      %s19 = sphi 0, %s17
      %s20 = sphi 0, %s18
      %s32 = sphi 0, %s34
      %s35 = sphi 0, %s32
      %s36 = sphi 0, %s35
      %s52 = sphi 0, %s36
      %s58 = sphi 0, %s60
      %s61 = sphi 0, %s58
      %s62 = sphi 0, %s61
      %s78 = sphi 0, %s62
      %s86 = sphi 0, %s88
      %s89 = sphi 0, %s86
      %s90 = sphi 0, %s89
      %s106 = sphi 0, %s90
    $region4: #{eca_forward.3} parent=1 // loop_header_branch
      %11 = sbr.rel (%p9) target = $region8
    $region5: #{eca_forward.3} parent=1 // loop_body
      %s13 = ssub.s32 %s8, 1
      %s14 = ssub.s32 %s8, 2
      %s21 = sadd.s32 1, %s16
      %p22 = scmp.ge.s32.totalorder %s21, 2
      %s23 = scalar_select %p22, 0, %s21
      %s24 = sadd.s32 1, %s15
      %s25 = scalar_select %p22, %s24, %s15
      %p26 = scmp.ge.s32.totalorder %s25, 1
      %s27 = scalar_select %p26, 0, %s25
      %s28 = ssub.s32 %s15, %s27
      %s29 = ssub.s32 %s16, %s23
      %s30 = sor.u32 %s28, %s29
      %p31 = scmp.eq.s32.totalorder %s30, 0
      %s33 = sadd.s32 %s32, 1
      %s34 = scalar_select %p31, %s32, %s33
      %p37 = pneg %p31
      %p38 = scmp.eq.s32.totalorder %s8, 1
      %p39 = por %p37, %p38
      %p40 = scmp.ne.s32.totalorder %s32, %s35
      %p41 = scmp.eq.s32.totalorder %s8, 0
      %p42 = por %p40, %p41
      %p43 = scmp.ne.s32.totalorder %s32, %s35
      %p44 = scmp.eq.s32.totalorder %s13, 1
      %p45 = por %p43, %p44
      %p46 = scmp.ne.s32.totalorder %s35, %s36
      %p47 = scmp.eq.s32.totalorder %s13, 0
      %p48 = por %p46, %p47
      %p49 = scmp.ne.s32.totalorder %s35, %s36
      %p50 = scmp.eq.s32.totalorder %s14, 1
      %p51 = por %p49, %p50
      %p53 = scmp.ne.s32.totalorder %s36, %s52
      %p54 = scmp.eq.s32.totalorder %s14, 0
      %p55 = por %p53, %p54
      %s56 = ssub.s32 %s15, %s27
      %p57 = scmp.eq.s32.totalorder %s56, 0
      %s59 = sadd.s32 %s58, 1
      %s60 = scalar_select %p57, %s58, %s59
      %p63 = pneg %p57
      %p64 = scmp.eq.s32.totalorder %s8, 1
      %p65 = por %p63, %p64
      %p66 = scmp.ne.s32.totalorder %s58, %s61
      %p67 = scmp.eq.s32.totalorder %s8, 0
      %p68 = por %p66, %p67
      %p69 = scmp.ne.s32.totalorder %s58, %s61
      %p70 = scmp.eq.s32.totalorder %s13, 1
      %p71 = por %p69, %p70
      %p72 = scmp.ne.s32.totalorder %s61, %s62
      %p73 = scmp.eq.s32.totalorder %s13, 0
      %p74 = por %p72, %p73
      %p75 = scmp.ne.s32.totalorder %s61, %s62
      %p76 = scmp.eq.s32.totalorder %s14, 1
      %p77 = por %p75, %p76
      %p79 = scmp.ne.s32.totalorder %s62, %s78
      %p80 = scmp.eq.s32.totalorder %s14, 0
      %p81 = por %p79, %p80
      %s82 = ssub.s32 %s15, %s27
      %s83 = ssub.s32 %s16, %s23
      %s84 = sor.u32 %s82, %s83
      %p85 = scmp.eq.s32.totalorder %s84, 0
      %s87 = sadd.s32 %s86, 1
      %s88 = scalar_select %p85, %s86, %s87
      %p91 = pneg %p85
      %p92 = scmp.eq.s32.totalorder %s8, 1
      %p93 = por %p91, %p92
      %p94 = scmp.ne.s32.totalorder %s86, %s89
      %p95 = scmp.eq.s32.totalorder %s8, 0
      %p96 = por %p94, %p95
      %p97 = scmp.ne.s32.totalorder %s86, %s89
      %p98 = scmp.eq.s32.totalorder %s13, 1
      %p99 = por %p97, %p98
      %p100 = scmp.ne.s32.totalorder %s89, %s90
      %p101 = scmp.eq.s32.totalorder %s13, 0
      %p102 = por %p100, %p101
      %p103 = scmp.ne.s32.totalorder %s89, %s90
      %p104 = scmp.eq.s32.totalorder %s14, 1
      %p105 = por %p103, %p104
      %p107 = scmp.ne.s32.totalorder %s90, %s106
      %p108 = scmp.eq.s32.totalorder %s14, 0
      %p109 = por %p107, %p108
      %p110 = scmp.le.s32.totalorder 1, %s8
      %p111 = scmp.lt.s32.totalorder %s8, 3
      %p112 = pnand %p110, %p111
      %p113 = pneg %p112
      // Predicated region
      $region9: #{eca_forward.3} parent=5 // pred_check
        _
      $region10: #{eca_forward.3} parent=5 // pred_check_branch
        %115 = sbr.rel (%p112) target = $region12
      $region11: #{eca_forward.3} parent=5 // pred_region
        %s116 = ssub.s32 %s8, 1
        // Predicated region
        $region13: #{eca_forward.3} parent=11 // pred_check
          %p117 = pneg %p74
        $region14: #{eca_forward.3} parent=11 // pred_check_branch
          %119 = sbr.rel (%p117) target = $region16
        $region15: #{eca_forward.3} parent=11 // pred_region
          %s120 = smul.u32 8, %s17
          %p121 = scmp.lt.s32.totalorder %s120, 7
          %s122 = scalar_select %p121, %s120, 7
          %s123 = smul.addr %s122, 8
          %s124 = scalar_lea.vmem %s1, %s123
          %s125 = smul.u32 8, %s17
        $region16: #{eca_forward.3} parent=11 // pred_fallthru
          _
      $region12: #{eca_forward.3} parent=5 // pred_fallthru
        _
      %p126 = scmp.lt.s32.totalorder %s8, 2
      // Predicated region
      $region17: #{eca_forward.3} parent=5 // pred_check
        %p127 = pneg %p126
      $region18: #{eca_forward.3} parent=5 // pred_check_branch
        %129 = sbr.rel (%p127) target = $region20
      $region19: #{eca_forward.3} parent=5 // pred_region
        // Predicated region
        $region21: #{eca_forward.3} parent=19 // pred_check
          %p130 = pneg %p42
        $region22: #{eca_forward.3} parent=19 // pred_check_branch
          %132 = sbr.rel (%p130) target = $region24
        $region23: #{eca_forward.3} parent=19 // pred_region
          %s133 = sand.u32 %s32, 1
          %s134 = sand.u32 %s32, 1
          %s135 = smul.addr %s134, 1024
          %s136 = scalar_lea.vmem [#allocation2], %s135
          %s137 = smul.u32 8, %s15
          %s138 = smul.u32 16, %s16
          %s139 = smul.addr %s137, 32
          %s140 = sadd.s32 %s138, %s139
          %s141 = smul.addr %s140, 8
          %s142 = scalar_lea.vmem %s0, %s141
          // Predicated region
          $region25: #{eca_forward.3} parent=23 // pred_check
            _
          $region26: #{eca_forward.3} parent=23 // pred_check_branch
            %144 = sbr.rel (0) target = $region28
          $region27: #{eca_forward.3} parent=23 // pred_region
            // Predicated region
            $region29: #{eca_forward.3} parent=27 // pred_check
              _
            $region30: #{eca_forward.3} parent=27 // pred_check_branch
              %146 = sbr.rel (0) target = $region32
            $region31: #{eca_forward.3} parent=27 // pred_region
              loop: start=0, step=1, limit=1
              $region33: #{eca_forward.3} parent=31 // loop_pre_header
                _
              $region34: #{eca_forward.3} parent=31 // loop_header
                %s148 = sphi 0, %s152
                %p149 = scmp.ge.s32.totalorder %s148, 1
                %s153 = sphi %s142, %s142
                %s154 = sphi %s136, %s136
              $region35: #{eca_forward.3} parent=31 // loop_header_branch
                %151 = sbr.rel (%p149) target = $region39
              $region36: #{eca_forward.3} parent=31 // loop_body
                %v155 = vld [vmem:[%s153] sm:$0xff]
                %156 = vst [vmem:[%s154] sm:$0xff] %v155
                %v157 = vld [vmem:[%s153 + $0x8] sm:$0xff]
                %158 = vst [vmem:[%s154 + $0x8] sm:$0xff] %v157
                %v159 = vld [vmem:[%s153 + $0x10] sm:$0xff]
                %160 = vst [vmem:[%s154 + $0x10] sm:$0xff] %v159
                %v161 = vld [vmem:[%s153 + $0x18] sm:$0xff]
                %162 = vst [vmem:[%s154 + $0x18] sm:$0xff] %v161
                %v163 = vld [vmem:[%s153 + $0x20] sm:$0xff]
                %164 = vst [vmem:[%s154 + $0x20] sm:$0xff] %v163
                %v165 = vld [vmem:[%s153 + $0x28] sm:$0xff]
                %166 = vst [vmem:[%s154 + $0x28] sm:$0xff] %v165
                %v167 = vld [vmem:[%s153 + $0x30] sm:$0xff]
                %168 = vst [vmem:[%s154 + $0x30] sm:$0xff] %v167
                %v169 = vld [vmem:[%s153 + $0x38] sm:$0xff]
                %170 = vst [vmem:[%s154 + $0x38] sm:$0xff] %v169
                %v171 = vld [vmem:[%s153 + $0x40] sm:$0xff]
                %172 = vst [vmem:[%s154 + $0x40] sm:$0xff] %v171
                %v173 = vld [vmem:[%s153 + $0x48] sm:$0xff]
                %174 = vst [vmem:[%s154 + $0x48] sm:$0xff] %v173
                %v175 = vld [vmem:[%s153 + $0x50] sm:$0xff]
                %176 = vst [vmem:[%s154 + $0x50] sm:$0xff] %v175
                %v177 = vld [vmem:[%s153 + $0x58] sm:$0xff]
                %178 = vst [vmem:[%s154 + $0x58] sm:$0xff] %v177
                %v179 = vld [vmem:[%s153 + $0x60] sm:$0xff]
                %180 = vst [vmem:[%s154 + $0x60] sm:$0xff] %v179
                %v181 = vld [vmem:[%s153 + $0x68] sm:$0xff]
                %182 = vst [vmem:[%s154 + $0x68] sm:$0xff] %v181
                %v183 = vld [vmem:[%s153 + $0x70] sm:$0xff]
                %184 = vst [vmem:[%s154 + $0x70] sm:$0xff] %v183
                %v185 = vld [vmem:[%s153 + $0x78] sm:$0xff]
                %186 = vst [vmem:[%s154 + $0x78] sm:$0xff] %v185
                %v187 = vld [vmem:[%s153 + $0x100] sm:$0xff]
                %188 = vst [vmem:[%s154 + $0x80] sm:$0xff] %v187
                %v189 = vld [vmem:[%s153 + $0x108] sm:$0xff]
                %190 = vst [vmem:[%s154 + $0x88] sm:$0xff] %v189
                %v191 = vld [vmem:[%s153 + $0x110] sm:$0xff]
                %192 = vst [vmem:[%s154 + $0x90] sm:$0xff] %v191
                %v193 = vld [vmem:[%s153 + $0x118] sm:$0xff]
                %194 = vst [vmem:[%s154 + $0x98] sm:$0xff] %v193
                %v195 = vld [vmem:[%s153 + $0x120] sm:$0xff]
                %196 = vst [vmem:[%s154 + $0xa0] sm:$0xff] %v195
                %v197 = vld [vmem:[%s153 + $0x128] sm:$0xff]
                %198 = vst [vmem:[%s154 + $0xa8] sm:$0xff] %v197
                %v199 = vld [vmem:[%s153 + $0x130] sm:$0xff]
                %200 = vst [vmem:[%s154 + $0xb0] sm:$0xff] %v199
                %v201 = vld [vmem:[%s153 + $0x138] sm:$0xff]
                %202 = vst [vmem:[%s154 + $0xb8] sm:$0xff] %v201
                %v203 = vld [vmem:[%s153 + $0x140] sm:$0xff]
                %204 = vst [vmem:[%s154 + $0xc0] sm:$0xff] %v203
                %v205 = vld [vmem:[%s153 + $0x148] sm:$0xff]
                %206 = vst [vmem:[%s154 + $0xc8] sm:$0xff] %v205
                %v207 = vld [vmem:[%s153 + $0x150] sm:$0xff]
                %208 = vst [vmem:[%s154 + $0xd0] sm:$0xff] %v207
                %v209 = vld [vmem:[%s153 + $0x158] sm:$0xff]
                %210 = vst [vmem:[%s154 + $0xd8] sm:$0xff] %v209
                %v211 = vld [vmem:[%s153 + $0x160] sm:$0xff]
                %212 = vst [vmem:[%s154 + $0xe0] sm:$0xff] %v211
                %v213 = vld [vmem:[%s153 + $0x168] sm:$0xff]
                %214 = vst [vmem:[%s154 + $0xe8] sm:$0xff] %v213
                %v215 = vld [vmem:[%s153 + $0x170] sm:$0xff]
                %216 = vst [vmem:[%s154 + $0xf0] sm:$0xff] %v215
                %v217 = vld [vmem:[%s153 + $0x178] sm:$0xff]
                %218 = vst [vmem:[%s154 + $0xf8] sm:$0xff] %v217
                %v219 = vld [vmem:[%s153 + $0x200] sm:$0xff]
                %220 = vst [vmem:[%s154 + $0x100] sm:$0xff] %v219
                %v221 = vld [vmem:[%s153 + $0x208] sm:$0xff]
                %222 = vst [vmem:[%s154 + $0x108] sm:$0xff] %v221
                %v223 = vld [vmem:[%s153 + $0x210] sm:$0xff]
                %224 = vst [vmem:[%s154 + $0x110] sm:$0xff] %v223
                %v225 = vld [vmem:[%s153 + $0x218] sm:$0xff]
                %226 = vst [vmem:[%s154 + $0x118] sm:$0xff] %v225
                %v227 = vld [vmem:[%s153 + $0x220] sm:$0xff]
                %228 = vst [vmem:[%s154 + $0x120] sm:$0xff] %v227
                %v229 = vld [vmem:[%s153 + $0x228] sm:$0xff]
                %230 = vst [vmem:[%s154 + $0x128] sm:$0xff] %v229
                %v231 = vld [vmem:[%s153 + $0x230] sm:$0xff]
                %232 = vst [vmem:[%s154 + $0x130] sm:$0xff] %v231
                %v233 = vld [vmem:[%s153 + $0x238] sm:$0xff]
                %234 = vst [vmem:[%s154 + $0x138] sm:$0xff] %v233
                %v235 = vld [vmem:[%s153 + $0x240] sm:$0xff]
                %236 = vst [vmem:[%s154 + $0x140] sm:$0xff] %v235
                %v237 = vld [vmem:[%s153 + $0x248] sm:$0xff]
                %238 = vst [vmem:[%s154 + $0x148] sm:$0xff] %v237
                %v239 = vld [vmem:[%s153 + $0x250] sm:$0xff]
                %240 = vst [vmem:[%s154 + $0x150] sm:$0xff] %v239
                %v241 = vld [vmem:[%s153 + $0x258] sm:$0xff]
                %242 = vst [vmem:[%s154 + $0x158] sm:$0xff] %v241
                %v243 = vld [vmem:[%s153 + $0x260] sm:$0xff]
                %244 = vst [vmem:[%s154 + $0x160] sm:$0xff] %v243
                %v245 = vld [vmem:[%s153 + $0x268] sm:$0xff]
                %246 = vst [vmem:[%s154 + $0x168] sm:$0xff] %v245
                %v247 = vld [vmem:[%s153 + $0x270] sm:$0xff]
                %248 = vst [vmem:[%s154 + $0x170] sm:$0xff] %v247
                %v249 = vld [vmem:[%s153 + $0x278] sm:$0xff]
                %250 = vst [vmem:[%s154 + $0x178] sm:$0xff] %v249
                %v251 = vld [vmem:[%s153 + $0x300] sm:$0xff]
                %252 = vst [vmem:[%s154 + $0x180] sm:$0xff] %v251
                %v253 = vld [vmem:[%s153 + $0x308] sm:$0xff]
                %254 = vst [vmem:[%s154 + $0x188] sm:$0xff] %v253
                %v255 = vld [vmem:[%s153 + $0x310] sm:$0xff]
                %256 = vst [vmem:[%s154 + $0x190] sm:$0xff] %v255
                %v257 = vld [vmem:[%s153 + $0x318] sm:$0xff]
                %258 = vst [vmem:[%s154 + $0x198] sm:$0xff] %v257
                %v259 = vld [vmem:[%s153 + $0x320] sm:$0xff]
                %260 = vst [vmem:[%s154 + $0x1a0] sm:$0xff] %v259
                %v261 = vld [vmem:[%s153 + $0x328] sm:$0xff]
                %262 = vst [vmem:[%s154 + $0x1a8] sm:$0xff] %v261
                %v263 = vld [vmem:[%s153 + $0x330] sm:$0xff]
                %264 = vst [vmem:[%s154 + $0x1b0] sm:$0xff] %v263
                %v265 = vld [vmem:[%s153 + $0x338] sm:$0xff]
                %266 = vst [vmem:[%s154 + $0x1b8] sm:$0xff] %v265
                %v267 = vld [vmem:[%s153 + $0x340] sm:$0xff]
                %268 = vst [vmem:[%s154 + $0x1c0] sm:$0xff] %v267
                %v269 = vld [vmem:[%s153 + $0x348] sm:$0xff]
                %270 = vst [vmem:[%s154 + $0x1c8] sm:$0xff] %v269
                %v271 = vld [vmem:[%s153 + $0x350] sm:$0xff]
                %272 = vst [vmem:[%s154 + $0x1d0] sm:$0xff] %v271
                %v273 = vld [vmem:[%s153 + $0x358] sm:$0xff]
                %274 = vst [vmem:[%s154 + $0x1d8] sm:$0xff] %v273
                %v275 = vld [vmem:[%s153 + $0x360] sm:$0xff]
                %276 = vst [vmem:[%s154 + $0x1e0] sm:$0xff] %v275
                %v277 = vld [vmem:[%s153 + $0x368] sm:$0xff]
                %278 = vst [vmem:[%s154 + $0x1e8] sm:$0xff] %v277
                %v279 = vld [vmem:[%s153 + $0x370] sm:$0xff]
                %280 = vst [vmem:[%s154 + $0x1f0] sm:$0xff] %v279
                %v281 = vld [vmem:[%s153 + $0x378] sm:$0xff]
                %282 = vst [vmem:[%s154 + $0x1f8] sm:$0xff] %v281
                %v283 = vld [vmem:[%s153 + $0x400] sm:$0xff]
                %284 = vst [vmem:[%s154 + $0x200] sm:$0xff] %v283
                %v285 = vld [vmem:[%s153 + $0x408] sm:$0xff]
                %286 = vst [vmem:[%s154 + $0x208] sm:$0xff] %v285
                %v287 = vld [vmem:[%s153 + $0x410] sm:$0xff]
                %288 = vst [vmem:[%s154 + $0x210] sm:$0xff] %v287
                %v289 = vld [vmem:[%s153 + $0x418] sm:$0xff]
                %290 = vst [vmem:[%s154 + $0x218] sm:$0xff] %v289
                %v291 = vld [vmem:[%s153 + $0x420] sm:$0xff]
                %292 = vst [vmem:[%s154 + $0x220] sm:$0xff] %v291
                %v293 = vld [vmem:[%s153 + $0x428] sm:$0xff]
                %294 = vst [vmem:[%s154 + $0x228] sm:$0xff] %v293
                %v295 = vld [vmem:[%s153 + $0x430] sm:$0xff]
                %296 = vst [vmem:[%s154 + $0x230] sm:$0xff] %v295
                %v297 = vld [vmem:[%s153 + $0x438] sm:$0xff]
                %298 = vst [vmem:[%s154 + $0x238] sm:$0xff] %v297
                %v299 = vld [vmem:[%s153 + $0x440] sm:$0xff]
                %300 = vst [vmem:[%s154 + $0x240] sm:$0xff] %v299
                %v301 = vld [vmem:[%s153 + $0x448] sm:$0xff]
                %302 = vst [vmem:[%s154 + $0x248] sm:$0xff] %v301
                %v303 = vld [vmem:[%s153 + $0x450] sm:$0xff]
                %304 = vst [vmem:[%s154 + $0x250] sm:$0xff] %v303
                %v305 = vld [vmem:[%s153 + $0x458] sm:$0xff]
                %306 = vst [vmem:[%s154 + $0x258] sm:$0xff] %v305
                %v307 = vld [vmem:[%s153 + $0x460] sm:$0xff]
                %308 = vst [vmem:[%s154 + $0x260] sm:$0xff] %v307
                %v309 = vld [vmem:[%s153 + $0x468] sm:$0xff]
                %310 = vst [vmem:[%s154 + $0x268] sm:$0xff] %v309
                %v311 = vld [vmem:[%s153 + $0x470] sm:$0xff]
                %312 = vst [vmem:[%s154 + $0x270] sm:$0xff] %v311
                %v313 = vld [vmem:[%s153 + $0x478] sm:$0xff]
                %314 = vst [vmem:[%s154 + $0x278] sm:$0xff] %v313
                %v315 = vld [vmem:[%s153 + $0x500] sm:$0xff]
                %316 = vst [vmem:[%s154 + $0x280] sm:$0xff] %v315
                %v317 = vld [vmem:[%s153 + $0x508] sm:$0xff]
                %318 = vst [vmem:[%s154 + $0x288] sm:$0xff] %v317
                %v319 = vld [vmem:[%s153 + $0x510] sm:$0xff]
                %320 = vst [vmem:[%s154 + $0x290] sm:$0xff] %v319
                %v321 = vld [vmem:[%s153 + $0x518] sm:$0xff]
                %322 = vst [vmem:[%s154 + $0x298] sm:$0xff] %v321
                %v323 = vld [vmem:[%s153 + $0x520] sm:$0xff]
                %324 = vst [vmem:[%s154 + $0x2a0] sm:$0xff] %v323
                %v325 = vld [vmem:[%s153 + $0x528] sm:$0xff]
                %326 = vst [vmem:[%s154 + $0x2a8] sm:$0xff] %v325
                %v327 = vld [vmem:[%s153 + $0x530] sm:$0xff]
                %328 = vst [vmem:[%s154 + $0x2b0] sm:$0xff] %v327
                %v329 = vld [vmem:[%s153 + $0x538] sm:$0xff]
                %330 = vst [vmem:[%s154 + $0x2b8] sm:$0xff] %v329
                %v331 = vld [vmem:[%s153 + $0x540] sm:$0xff]
                %332 = vst [vmem:[%s154 + $0x2c0] sm:$0xff] %v331
                %v333 = vld [vmem:[%s153 + $0x548] sm:$0xff]
                %334 = vst [vmem:[%s154 + $0x2c8] sm:$0xff] %v333
                %v335 = vld [vmem:[%s153 + $0x550] sm:$0xff]
                %336 = vst [vmem:[%s154 + $0x2d0] sm:$0xff] %v335
                %v337 = vld [vmem:[%s153 + $0x558] sm:$0xff]
                %338 = vst [vmem:[%s154 + $0x2d8] sm:$0xff] %v337
                %v339 = vld [vmem:[%s153 + $0x560] sm:$0xff]
                %340 = vst [vmem:[%s154 + $0x2e0] sm:$0xff] %v339
                %v341 = vld [vmem:[%s153 + $0x568] sm:$0xff]
                %342 = vst [vmem:[%s154 + $0x2e8] sm:$0xff] %v341
                %v343 = vld [vmem:[%s153 + $0x570] sm:$0xff]
                %344 = vst [vmem:[%s154 + $0x2f0] sm:$0xff] %v343
                %v345 = vld [vmem:[%s153 + $0x578] sm:$0xff]
                %346 = vst [vmem:[%s154 + $0x2f8] sm:$0xff] %v345
                %v347 = vld [vmem:[%s153 + $0x600] sm:$0xff]
                %348 = vst [vmem:[%s154 + $0x300] sm:$0xff] %v347
                %v349 = vld [vmem:[%s153 + $0x608] sm:$0xff]
                %350 = vst [vmem:[%s154 + $0x308] sm:$0xff] %v349
                %v351 = vld [vmem:[%s153 + $0x610] sm:$0xff]
                %352 = vst [vmem:[%s154 + $0x310] sm:$0xff] %v351
                %v353 = vld [vmem:[%s153 + $0x618] sm:$0xff]
                %354 = vst [vmem:[%s154 + $0x318] sm:$0xff] %v353
                %v355 = vld [vmem:[%s153 + $0x620] sm:$0xff]
                %356 = vst [vmem:[%s154 + $0x320] sm:$0xff] %v355
                %v357 = vld [vmem:[%s153 + $0x628] sm:$0xff]
                %358 = vst [vmem:[%s154 + $0x328] sm:$0xff] %v357
                %v359 = vld [vmem:[%s153 + $0x630] sm:$0xff]
                %360 = vst [vmem:[%s154 + $0x330] sm:$0xff] %v359
                %v361 = vld [vmem:[%s153 + $0x638] sm:$0xff]
                %362 = vst [vmem:[%s154 + $0x338] sm:$0xff] %v361
                %v363 = vld [vmem:[%s153 + $0x640] sm:$0xff]
                %364 = vst [vmem:[%s154 + $0x340] sm:$0xff] %v363
                %v365 = vld [vmem:[%s153 + $0x648] sm:$0xff]
                %366 = vst [vmem:[%s154 + $0x348] sm:$0xff] %v365
                %v367 = vld [vmem:[%s153 + $0x650] sm:$0xff]
                %368 = vst [vmem:[%s154 + $0x350] sm:$0xff] %v367
                %v369 = vld [vmem:[%s153 + $0x658] sm:$0xff]
                %370 = vst [vmem:[%s154 + $0x358] sm:$0xff] %v369
                %v371 = vld [vmem:[%s153 + $0x660] sm:$0xff]
                %372 = vst [vmem:[%s154 + $0x360] sm:$0xff] %v371
                %v373 = vld [vmem:[%s153 + $0x668] sm:$0xff]
                %374 = vst [vmem:[%s154 + $0x368] sm:$0xff] %v373
                %v375 = vld [vmem:[%s153 + $0x670] sm:$0xff]
                %376 = vst [vmem:[%s154 + $0x370] sm:$0xff] %v375
                %v377 = vld [vmem:[%s153 + $0x678] sm:$0xff]
                %378 = vst [vmem:[%s154 + $0x378] sm:$0xff] %v377
                %v379 = vld [vmem:[%s153 + $0x700] sm:$0xff]
                %380 = vst [vmem:[%s154 + $0x380] sm:$0xff] %v379
                %v381 = vld [vmem:[%s153 + $0x708] sm:$0xff]
                %382 = vst [vmem:[%s154 + $0x388] sm:$0xff] %v381
                %v383 = vld [vmem:[%s153 + $0x710] sm:$0xff]
                %384 = vst [vmem:[%s154 + $0x390] sm:$0xff] %v383
                %v385 = vld [vmem:[%s153 + $0x718] sm:$0xff]
                %386 = vst [vmem:[%s154 + $0x398] sm:$0xff] %v385
                %v387 = vld [vmem:[%s153 + $0x720] sm:$0xff]
                %388 = vst [vmem:[%s154 + $0x3a0] sm:$0xff] %v387
                %v389 = vld [vmem:[%s153 + $0x728] sm:$0xff]
                %390 = vst [vmem:[%s154 + $0x3a8] sm:$0xff] %v389
                %v391 = vld [vmem:[%s153 + $0x730] sm:$0xff]
                %392 = vst [vmem:[%s154 + $0x3b0] sm:$0xff] %v391
                %v393 = vld [vmem:[%s153 + $0x738] sm:$0xff]
                %394 = vst [vmem:[%s154 + $0x3b8] sm:$0xff] %v393
                %v395 = vld [vmem:[%s153 + $0x740] sm:$0xff]
                %396 = vst [vmem:[%s154 + $0x3c0] sm:$0xff] %v395
                %v397 = vld [vmem:[%s153 + $0x748] sm:$0xff]
                %398 = vst [vmem:[%s154 + $0x3c8] sm:$0xff] %v397
                %v399 = vld [vmem:[%s153 + $0x750] sm:$0xff]
                %400 = vst [vmem:[%s154 + $0x3d0] sm:$0xff] %v399
                %v401 = vld [vmem:[%s153 + $0x758] sm:$0xff]
                %402 = vst [vmem:[%s154 + $0x3d8] sm:$0xff] %v401
                %v403 = vld [vmem:[%s153 + $0x760] sm:$0xff]
                %404 = vst [vmem:[%s154 + $0x3e0] sm:$0xff] %v403
                %v405 = vld [vmem:[%s153 + $0x768] sm:$0xff]
                %406 = vst [vmem:[%s154 + $0x3e8] sm:$0xff] %v405
                %v407 = vld [vmem:[%s153 + $0x770] sm:$0xff]
                %408 = vst [vmem:[%s154 + $0x3f0] sm:$0xff] %v407
                %v409 = vld [vmem:[%s153 + $0x778] sm:$0xff]
                %410 = vst [vmem:[%s154 + $0x3f8] sm:$0xff] %v409
              $region37: #{eca_forward.3} parent=31 // loop_footer
                %s152 = sadd.s32 1, %s148
              $region38: #{eca_forward.3} parent=31 // loop_footer_branch
                %147 = sbr.rel target = $region34
              $region39: #{eca_forward.3} parent=31 // loop_exit
                _
            $region32: #{eca_forward.3} parent=27 // pred_fallthru
              _
            // Predicated region
            $region40: #{eca_forward.3} parent=27 // pred_check
              _
            $region41: #{eca_forward.3} parent=27 // pred_check_branch
              %412 = sbr.rel target = $region43
            $region42: #{eca_forward.3} parent=27 // pred_region
              _
            $region43: #{eca_forward.3} parent=27 // pred_fallthru
              _
          $region28: #{eca_forward.3} parent=23 // pred_fallthru
            _
          %413 = vnop
        $region24: #{eca_forward.3} parent=19 // pred_fallthru
          _
      $region20: #{eca_forward.3} parent=5 // pred_fallthru
        _
      %p414 = scmp.le.s32.totalorder 1, %s8
      %p415 = scmp.lt.s32.totalorder %s8, 3
      %p416 = pnand %p414, %p415
      %p417 = pneg %p416
      // Predicated region
      $region44: #{eca_forward.3} parent=5 // pred_check
        _
      $region45: #{eca_forward.3} parent=5 // pred_check_branch
        %419 = sbr.rel (%p416) target = $region47
      $region46: #{eca_forward.3} parent=5 // pred_region
        %s420 = ssub.s32 %s8, 1
        %s421 = sand.u32 %s35, 1
        %s422 = sand.u32 %s35, 1
        %s423 = smul.addr %s422, 1024
        %s424 = scalar_lea.vmem [#allocation2], %s423
        // Predicated region
        $region48: #{eca_forward.3} parent=46 // pred_check
          %p425 = pneg %p48
        $region49: #{eca_forward.3} parent=46 // pred_check_branch
          %427 = sbr.rel (%p425) target = $region51
        $region50: #{eca_forward.3} parent=46 // pred_region
          _
        $region51: #{eca_forward.3} parent=46 // pred_fallthru
          _
        %s428 = sand.u32 %s35, 1
        %s429 = sand.u32 %s35, 1
        %s430 = smul.addr %s429, 1024
        %s431 = scalar_lea.vmem [#allocation2], %s430
        %p432 = pneg %p48
        %p433 = pneg %p45
        %s434 = smul.u32 8, %s17
        %p435 = scmp.lt.s32.totalorder %s434, 7
        %s436 = scalar_select %p435, %s434, 7
        %s437 = smul.addr %s436, 8
        %s438 = scalar_lea.vmem %s1, %s437
        %p439 = pneg %p74
        %p440 = pneg %p71
        %p441 = pneg %p102
        %p442 = pneg %p99
        %s443 = sand.u32 %s89, 1
        %s444 = sand.u32 %s89, 1
        %s445 = smul.addr %s444, 1024
        %s446 = scalar_lea.vmem [#allocation3], %s445
        %s447 = smul.u32 8, %s17
        %s448 = smul.u32 16, %s18
        %s449 = smul.u32 8, %s17
        %p450 = scmp.lt.s32.totalorder %s449, 7
        %s451 = scalar_select %p450, %s449, 7
        %s452 = smul.addr %s451, 8
        %s453 = scalar_lea.vmem %s1, %s452
        %s454 = smul.u32 8, %s17
        %s455 = smul.u32 8, %s17
        %s456 = smul.u32 16, %s18
        %v457 = vld [vmem:[%s424] sm:$0xff]
        %v458 = vld [vmem:[%s424 + $0x8] sm:$0xff]
        %v459 = vld [vmem:[%s424 + $0x10] sm:$0xff]
        %v460 = vld [vmem:[%s424 + $0x18] sm:$0xff]
        %v461 = vld [vmem:[%s424 + $0x20] sm:$0xff]
        %v462 = vld [vmem:[%s424 + $0x28] sm:$0xff]
        %v463 = vld [vmem:[%s424 + $0x30] sm:$0xff]
        %v464 = vld [vmem:[%s424 + $0x38] sm:$0xff]
        %v465 = vld [vmem:[%s424 + $0x40] sm:$0xff]
        %v466 = vld [vmem:[%s424 + $0x48] sm:$0xff]
        %v467 = vld [vmem:[%s424 + $0x50] sm:$0xff]
        %v468 = vld [vmem:[%s424 + $0x58] sm:$0xff]
        %v469 = vld [vmem:[%s424 + $0x60] sm:$0xff]
        %v470 = vld [vmem:[%s424 + $0x68] sm:$0xff]
        %v471 = vld [vmem:[%s424 + $0x70] sm:$0xff]
        %v472 = vld [vmem:[%s424 + $0x78] sm:$0xff]
        %v473 = vld [vmem:[%s424 + $0x80] sm:$0xff]
        %v474 = vld [vmem:[%s424 + $0x88] sm:$0xff]
        %v475 = vld [vmem:[%s424 + $0x90] sm:$0xff]
        %v476 = vld [vmem:[%s424 + $0x98] sm:$0xff]
        %v477 = vld [vmem:[%s424 + $0xa0] sm:$0xff]
        %v478 = vld [vmem:[%s424 + $0xa8] sm:$0xff]
        %v479 = vld [vmem:[%s424 + $0xb0] sm:$0xff]
        %v480 = vld [vmem:[%s424 + $0xb8] sm:$0xff]
        %v481 = vld [vmem:[%s424 + $0xc0] sm:$0xff]
        %v482 = vld [vmem:[%s424 + $0xc8] sm:$0xff]
        %v483 = vld [vmem:[%s424 + $0xd0] sm:$0xff]
        %v484 = vld [vmem:[%s424 + $0xd8] sm:$0xff]
        %v485 = vld [vmem:[%s424 + $0xe0] sm:$0xff]
        %v486 = vld [vmem:[%s424 + $0xe8] sm:$0xff]
        %v487 = vld [vmem:[%s424 + $0xf0] sm:$0xff]
        %v488 = vld [vmem:[%s424 + $0xf8] sm:$0xff]
        %v489 = vld [vmem:[%s424 + $0x100] sm:$0xff]
        %v490 = vld [vmem:[%s424 + $0x108] sm:$0xff]
        %v491 = vld [vmem:[%s424 + $0x110] sm:$0xff]
        %v492 = vld [vmem:[%s424 + $0x118] sm:$0xff]
        %v493 = vld [vmem:[%s424 + $0x120] sm:$0xff]
        %v494 = vld [vmem:[%s424 + $0x128] sm:$0xff]
        %v495 = vld [vmem:[%s424 + $0x130] sm:$0xff]
        %v496 = vld [vmem:[%s424 + $0x138] sm:$0xff]
        %v497 = vld [vmem:[%s424 + $0x140] sm:$0xff]
        %v498 = vld [vmem:[%s424 + $0x148] sm:$0xff]
        %v499 = vld [vmem:[%s424 + $0x150] sm:$0xff]
        %v500 = vld [vmem:[%s424 + $0x158] sm:$0xff]
        %v501 = vld [vmem:[%s424 + $0x160] sm:$0xff]
        %v502 = vld [vmem:[%s424 + $0x168] sm:$0xff]
        %v503 = vld [vmem:[%s424 + $0x170] sm:$0xff]
        %v504 = vld [vmem:[%s424 + $0x178] sm:$0xff]
        %v505 = vld [vmem:[%s424 + $0x180] sm:$0xff]
        %v506 = vld [vmem:[%s424 + $0x188] sm:$0xff]
        %v507 = vld [vmem:[%s424 + $0x190] sm:$0xff]
        %v508 = vld [vmem:[%s424 + $0x198] sm:$0xff]
        %v509 = vld [vmem:[%s424 + $0x1a0] sm:$0xff]
        %v510 = vld [vmem:[%s424 + $0x1a8] sm:$0xff]
        %v511 = vld [vmem:[%s424 + $0x1b0] sm:$0xff]
        %v512 = vld [vmem:[%s424 + $0x1b8] sm:$0xff]
        %v513 = vld [vmem:[%s424 + $0x1c0] sm:$0xff]
        %v514 = vld [vmem:[%s424 + $0x1c8] sm:$0xff]
        %v515 = vld [vmem:[%s424 + $0x1d0] sm:$0xff]
        %v516 = vld [vmem:[%s424 + $0x1d8] sm:$0xff]
        %v517 = vld [vmem:[%s424 + $0x1e0] sm:$0xff]
        %v518 = vld [vmem:[%s424 + $0x1e8] sm:$0xff]
        %v519 = vld [vmem:[%s424 + $0x1f0] sm:$0xff]
        %v520 = vld [vmem:[%s424 + $0x1f8] sm:$0xff]
        %v521 = vld [vmem:[%s424 + $0x200] sm:$0xff]
        %v522 = vld [vmem:[%s424 + $0x208] sm:$0xff]
        %v523 = vld [vmem:[%s424 + $0x210] sm:$0xff]
        %v524 = vld [vmem:[%s424 + $0x218] sm:$0xff]
        %v525 = vld [vmem:[%s424 + $0x220] sm:$0xff]
        %v526 = vld [vmem:[%s424 + $0x228] sm:$0xff]
        %v527 = vld [vmem:[%s424 + $0x230] sm:$0xff]
        %v528 = vld [vmem:[%s424 + $0x238] sm:$0xff]
        %v529 = vld [vmem:[%s424 + $0x240] sm:$0xff]
        %v530 = vld [vmem:[%s424 + $0x248] sm:$0xff]
        %v531 = vld [vmem:[%s424 + $0x250] sm:$0xff]
        %v532 = vld [vmem:[%s424 + $0x258] sm:$0xff]
        %v533 = vld [vmem:[%s424 + $0x260] sm:$0xff]
        %v534 = vld [vmem:[%s424 + $0x268] sm:$0xff]
        %v535 = vld [vmem:[%s424 + $0x270] sm:$0xff]
        %v536 = vld [vmem:[%s424 + $0x278] sm:$0xff]
        %v537 = vld [vmem:[%s424 + $0x280] sm:$0xff]
        %v538 = vld [vmem:[%s424 + $0x288] sm:$0xff]
        %v539 = vld [vmem:[%s424 + $0x290] sm:$0xff]
        %v540 = vld [vmem:[%s424 + $0x298] sm:$0xff]
        %v541 = vld [vmem:[%s424 + $0x2a0] sm:$0xff]
        %v542 = vld [vmem:[%s424 + $0x2a8] sm:$0xff]
        %v543 = vld [vmem:[%s424 + $0x2b0] sm:$0xff]
        %v544 = vld [vmem:[%s424 + $0x2b8] sm:$0xff]
        %v545 = vld [vmem:[%s424 + $0x2c0] sm:$0xff]
        %v546 = vld [vmem:[%s424 + $0x2c8] sm:$0xff]
        %v547 = vld [vmem:[%s424 + $0x2d0] sm:$0xff]
        %v548 = vld [vmem:[%s424 + $0x2d8] sm:$0xff]
        %v549 = vld [vmem:[%s424 + $0x2e0] sm:$0xff]
        %v550 = vld [vmem:[%s424 + $0x2e8] sm:$0xff]
        %v551 = vld [vmem:[%s424 + $0x2f0] sm:$0xff]
        %v552 = vld [vmem:[%s424 + $0x2f8] sm:$0xff]
        %v553 = vld [vmem:[%s424 + $0x300] sm:$0xff]
        %v554 = vld [vmem:[%s424 + $0x308] sm:$0xff]
        %v555 = vld [vmem:[%s424 + $0x310] sm:$0xff]
        %v556 = vld [vmem:[%s424 + $0x318] sm:$0xff]
        %v557 = vld [vmem:[%s424 + $0x320] sm:$0xff]
        %v558 = vld [vmem:[%s424 + $0x328] sm:$0xff]
        %v559 = vld [vmem:[%s424 + $0x330] sm:$0xff]
        %v560 = vld [vmem:[%s424 + $0x338] sm:$0xff]
        %v561 = vld [vmem:[%s424 + $0x340] sm:$0xff]
        %v562 = vld [vmem:[%s424 + $0x348] sm:$0xff]
        %v563 = vld [vmem:[%s424 + $0x350] sm:$0xff]
        %v564 = vld [vmem:[%s424 + $0x358] sm:$0xff]
        %v565 = vld [vmem:[%s424 + $0x360] sm:$0xff]
        %v566 = vld [vmem:[%s424 + $0x368] sm:$0xff]
        %v567 = vld [vmem:[%s424 + $0x370] sm:$0xff]
        %v568 = vld [vmem:[%s424 + $0x378] sm:$0xff]
        %v569 = vld [vmem:[%s424 + $0x380] sm:$0xff]
        %v570 = vld [vmem:[%s424 + $0x388] sm:$0xff]
        %v571 = vld [vmem:[%s424 + $0x390] sm:$0xff]
        %v572 = vld [vmem:[%s424 + $0x398] sm:$0xff]
        %v573 = vld [vmem:[%s424 + $0x3a0] sm:$0xff]
        %v574 = vld [vmem:[%s424 + $0x3a8] sm:$0xff]
        %v575 = vld [vmem:[%s424 + $0x3b0] sm:$0xff]
        %v576 = vld [vmem:[%s424 + $0x3b8] sm:$0xff]
        %v577 = vld [vmem:[%s424 + $0x3c0] sm:$0xff]
        %v578 = vld [vmem:[%s424 + $0x3c8] sm:$0xff]
        %v579 = vld [vmem:[%s424 + $0x3d0] sm:$0xff]
        %v580 = vld [vmem:[%s424 + $0x3d8] sm:$0xff]
        %v581 = vld [vmem:[%s424 + $0x3e0] sm:$0xff]
        %v582 = vld [vmem:[%s424 + $0x3e8] sm:$0xff]
        %v583 = vld [vmem:[%s424 + $0x3f0] sm:$0xff]
        %v584 = vld [vmem:[%s424 + $0x3f8] sm:$0xff]
        %v585 = vld [vmem:[%s453] sm:$0xff]
        %v586 = vld [vmem:[%s453 + $0x8] sm:$0xff]
        %v587 = vld [vmem:[%s453 + $0x10] sm:$0xff]
        %v588 = vld [vmem:[%s453 + $0x18] sm:$0xff]
        %v589 = vld [vmem:[%s453 + $0x20] sm:$0xff]
        %v590 = vld [vmem:[%s453 + $0x28] sm:$0xff]
        %v591 = vld [vmem:[%s453 + $0x30] sm:$0xff]
        %v592 = vld [vmem:[%s453 + $0x38] sm:$0xff]
        %594 = vset.pattern.permute.xlu0 0
        %595 = vperm.xlu0 %594, %v585
        %v596 = vpop.permute.xlu0 %595
        %599 = vset.pattern.permute.xlu0 0
        %600 = vperm.xlu0 %599, %v586
        %v601 = vpop.permute.xlu0 %600
        %604 = vset.pattern.permute.xlu0 0
        %605 = vperm.xlu0 %604, %v587
        %v606 = vpop.permute.xlu0 %605
        %609 = vset.pattern.permute.xlu0 0
        %610 = vperm.xlu0 %609, %v588
        %v611 = vpop.permute.xlu0 %610
        %614 = vset.pattern.permute.xlu0 0
        %615 = vperm.xlu0 %614, %v589
        %v616 = vpop.permute.xlu0 %615
        %619 = vset.pattern.permute.xlu0 0
        %620 = vperm.xlu0 %619, %v590
        %v621 = vpop.permute.xlu0 %620
        %624 = vset.pattern.permute.xlu0 0
        %625 = vperm.xlu0 %624, %v591
        %v626 = vpop.permute.xlu0 %625
        %629 = vset.pattern.permute.xlu0 0
        %630 = vperm.xlu0 %629, %v592
        %v631 = vpop.permute.xlu0 %630
        %v633 = vmul.f32 %v457, %v596
        %v634 = vmul.f32 %v458, %v596
        %v635 = vmul.f32 %v459, %v596
        %v636 = vmul.f32 %v460, %v596
        %v637 = vmul.f32 %v461, %v596
        %v638 = vmul.f32 %v462, %v596
        %v639 = vmul.f32 %v463, %v596
        %v640 = vmul.f32 %v464, %v596
        %v641 = vmul.f32 %v465, %v596
        %v642 = vmul.f32 %v466, %v596
        %v643 = vmul.f32 %v467, %v596
        %v644 = vmul.f32 %v468, %v596
        %v645 = vmul.f32 %v469, %v596
        %v646 = vmul.f32 %v470, %v596
        %v647 = vmul.f32 %v471, %v596
        %v648 = vmul.f32 %v472, %v596
        %v649 = vmul.f32 %v473, %v601
        %v650 = vmul.f32 %v474, %v601
        %v651 = vmul.f32 %v475, %v601
        %v652 = vmul.f32 %v476, %v601
        %v653 = vmul.f32 %v477, %v601
        %v654 = vmul.f32 %v478, %v601
        %v655 = vmul.f32 %v479, %v601
        %v656 = vmul.f32 %v480, %v601
        %v657 = vmul.f32 %v481, %v601
        %v658 = vmul.f32 %v482, %v601
        %v659 = vmul.f32 %v483, %v601
        %v660 = vmul.f32 %v484, %v601
        %v661 = vmul.f32 %v485, %v601
        %v662 = vmul.f32 %v486, %v601
        %v663 = vmul.f32 %v487, %v601
        %v664 = vmul.f32 %v488, %v601
        %v665 = vmul.f32 %v489, %v606
        %v666 = vmul.f32 %v490, %v606
        %v667 = vmul.f32 %v491, %v606
        %v668 = vmul.f32 %v492, %v606
        %v669 = vmul.f32 %v493, %v606
        %v670 = vmul.f32 %v494, %v606
        %v671 = vmul.f32 %v495, %v606
        %v672 = vmul.f32 %v496, %v606
        %v673 = vmul.f32 %v497, %v606
        %v674 = vmul.f32 %v498, %v606
        %v675 = vmul.f32 %v499, %v606
        %v676 = vmul.f32 %v500, %v606
        %v677 = vmul.f32 %v501, %v606
        %v678 = vmul.f32 %v502, %v606
        %v679 = vmul.f32 %v503, %v606
        %v680 = vmul.f32 %v504, %v606
        %v681 = vmul.f32 %v505, %v611
        %v682 = vmul.f32 %v506, %v611
        %v683 = vmul.f32 %v507, %v611
        %v684 = vmul.f32 %v508, %v611
        %v685 = vmul.f32 %v509, %v611
        %v686 = vmul.f32 %v510, %v611
        %v687 = vmul.f32 %v511, %v611
        %v688 = vmul.f32 %v512, %v611
        %v689 = vmul.f32 %v513, %v611
        %v690 = vmul.f32 %v514, %v611
        %v691 = vmul.f32 %v515, %v611
        %v692 = vmul.f32 %v516, %v611
        %v693 = vmul.f32 %v517, %v611
        %v694 = vmul.f32 %v518, %v611
        %v695 = vmul.f32 %v519, %v611
        %v696 = vmul.f32 %v520, %v611
        %v697 = vmul.f32 %v521, %v616
        %v698 = vmul.f32 %v522, %v616
        %v699 = vmul.f32 %v523, %v616
        %v700 = vmul.f32 %v524, %v616
        %v701 = vmul.f32 %v525, %v616
        %v702 = vmul.f32 %v526, %v616
        %v703 = vmul.f32 %v527, %v616
        %v704 = vmul.f32 %v528, %v616
        %v705 = vmul.f32 %v529, %v616
        %v706 = vmul.f32 %v530, %v616
        %v707 = vmul.f32 %v531, %v616
        %v708 = vmul.f32 %v532, %v616
        %v709 = vmul.f32 %v533, %v616
        %v710 = vmul.f32 %v534, %v616
        %v711 = vmul.f32 %v535, %v616
        %v712 = vmul.f32 %v536, %v616
        %v713 = vmul.f32 %v537, %v621
        %v714 = vmul.f32 %v538, %v621
        %v715 = vmul.f32 %v539, %v621
        %v716 = vmul.f32 %v540, %v621
        %v717 = vmul.f32 %v541, %v621
        %v718 = vmul.f32 %v542, %v621
        %v719 = vmul.f32 %v543, %v621
        %v720 = vmul.f32 %v544, %v621
        %v721 = vmul.f32 %v545, %v621
        %v722 = vmul.f32 %v546, %v621
        %v723 = vmul.f32 %v547, %v621
        %v724 = vmul.f32 %v548, %v621
        %v725 = vmul.f32 %v549, %v621
        %v726 = vmul.f32 %v550, %v621
        %v727 = vmul.f32 %v551, %v621
        %v728 = vmul.f32 %v552, %v621
        %v729 = vmul.f32 %v553, %v626
        %v730 = vmul.f32 %v554, %v626
        %v731 = vmul.f32 %v555, %v626
        %v732 = vmul.f32 %v556, %v626
        %v733 = vmul.f32 %v557, %v626
        %v734 = vmul.f32 %v558, %v626
        %v735 = vmul.f32 %v559, %v626
        %v736 = vmul.f32 %v560, %v626
        %v737 = vmul.f32 %v561, %v626
        %v738 = vmul.f32 %v562, %v626
        %v739 = vmul.f32 %v563, %v626
        %v740 = vmul.f32 %v564, %v626
        %v741 = vmul.f32 %v565, %v626
        %v742 = vmul.f32 %v566, %v626
        %v743 = vmul.f32 %v567, %v626
        %v744 = vmul.f32 %v568, %v626
        %v745 = vmul.f32 %v569, %v631
        %v746 = vmul.f32 %v570, %v631
        %v747 = vmul.f32 %v571, %v631
        %v748 = vmul.f32 %v572, %v631
        %v749 = vmul.f32 %v573, %v631
        %v750 = vmul.f32 %v574, %v631
        %v751 = vmul.f32 %v575, %v631
        %v752 = vmul.f32 %v576, %v631
        %v753 = vmul.f32 %v577, %v631
        %v754 = vmul.f32 %v578, %v631
        %v755 = vmul.f32 %v579, %v631
        %v756 = vmul.f32 %v580, %v631
        %v757 = vmul.f32 %v581, %v631
        %v758 = vmul.f32 %v582, %v631
        %v759 = vmul.f32 %v583, %v631
        %v760 = vmul.f32 %v584, %v631
        %761 = vst [vmem:[%s446] sm:$0xff] %v633
        %762 = vst [vmem:[%s446 + $0x8] sm:$0xff] %v634
        %763 = vst [vmem:[%s446 + $0x10] sm:$0xff] %v635
        %764 = vst [vmem:[%s446 + $0x18] sm:$0xff] %v636
        %765 = vst [vmem:[%s446 + $0x20] sm:$0xff] %v637
        %766 = vst [vmem:[%s446 + $0x28] sm:$0xff] %v638
        %767 = vst [vmem:[%s446 + $0x30] sm:$0xff] %v639
        %768 = vst [vmem:[%s446 + $0x38] sm:$0xff] %v640
        %769 = vst [vmem:[%s446 + $0x40] sm:$0xff] %v641
        %770 = vst [vmem:[%s446 + $0x48] sm:$0xff] %v642
        %771 = vst [vmem:[%s446 + $0x50] sm:$0xff] %v643
        %772 = vst [vmem:[%s446 + $0x58] sm:$0xff] %v644
        %773 = vst [vmem:[%s446 + $0x60] sm:$0xff] %v645
        %774 = vst [vmem:[%s446 + $0x68] sm:$0xff] %v646
        %775 = vst [vmem:[%s446 + $0x70] sm:$0xff] %v647
        %776 = vst [vmem:[%s446 + $0x78] sm:$0xff] %v648
        %777 = vst [vmem:[%s446 + $0x80] sm:$0xff] %v649
        %778 = vst [vmem:[%s446 + $0x88] sm:$0xff] %v650
        %779 = vst [vmem:[%s446 + $0x90] sm:$0xff] %v651
        %780 = vst [vmem:[%s446 + $0x98] sm:$0xff] %v652
        %781 = vst [vmem:[%s446 + $0xa0] sm:$0xff] %v653
        %782 = vst [vmem:[%s446 + $0xa8] sm:$0xff] %v654
        %783 = vst [vmem:[%s446 + $0xb0] sm:$0xff] %v655
        %784 = vst [vmem:[%s446 + $0xb8] sm:$0xff] %v656
        %785 = vst [vmem:[%s446 + $0xc0] sm:$0xff] %v657
        %786 = vst [vmem:[%s446 + $0xc8] sm:$0xff] %v658
        %787 = vst [vmem:[%s446 + $0xd0] sm:$0xff] %v659
        %788 = vst [vmem:[%s446 + $0xd8] sm:$0xff] %v660
        %789 = vst [vmem:[%s446 + $0xe0] sm:$0xff] %v661
        %790 = vst [vmem:[%s446 + $0xe8] sm:$0xff] %v662
        %791 = vst [vmem:[%s446 + $0xf0] sm:$0xff] %v663
        %792 = vst [vmem:[%s446 + $0xf8] sm:$0xff] %v664
        %793 = vst [vmem:[%s446 + $0x100] sm:$0xff] %v665
        %794 = vst [vmem:[%s446 + $0x108] sm:$0xff] %v666
        %795 = vst [vmem:[%s446 + $0x110] sm:$0xff] %v667
        %796 = vst [vmem:[%s446 + $0x118] sm:$0xff] %v668
        %797 = vst [vmem:[%s446 + $0x120] sm:$0xff] %v669
        %798 = vst [vmem:[%s446 + $0x128] sm:$0xff] %v670
        %799 = vst [vmem:[%s446 + $0x130] sm:$0xff] %v671
        %800 = vst [vmem:[%s446 + $0x138] sm:$0xff] %v672
        %801 = vst [vmem:[%s446 + $0x140] sm:$0xff] %v673
        %802 = vst [vmem:[%s446 + $0x148] sm:$0xff] %v674
        %803 = vst [vmem:[%s446 + $0x150] sm:$0xff] %v675
        %804 = vst [vmem:[%s446 + $0x158] sm:$0xff] %v676
        %805 = vst [vmem:[%s446 + $0x160] sm:$0xff] %v677
        %806 = vst [vmem:[%s446 + $0x168] sm:$0xff] %v678
        %807 = vst [vmem:[%s446 + $0x170] sm:$0xff] %v679
        %808 = vst [vmem:[%s446 + $0x178] sm:$0xff] %v680
        %809 = vst [vmem:[%s446 + $0x180] sm:$0xff] %v681
        %810 = vst [vmem:[%s446 + $0x188] sm:$0xff] %v682
        %811 = vst [vmem:[%s446 + $0x190] sm:$0xff] %v683
        %812 = vst [vmem:[%s446 + $0x198] sm:$0xff] %v684
        %813 = vst [vmem:[%s446 + $0x1a0] sm:$0xff] %v685
        %814 = vst [vmem:[%s446 + $0x1a8] sm:$0xff] %v686
        %815 = vst [vmem:[%s446 + $0x1b0] sm:$0xff] %v687
        %816 = vst [vmem:[%s446 + $0x1b8] sm:$0xff] %v688
        %817 = vst [vmem:[%s446 + $0x1c0] sm:$0xff] %v689
        %818 = vst [vmem:[%s446 + $0x1c8] sm:$0xff] %v690
        %819 = vst [vmem:[%s446 + $0x1d0] sm:$0xff] %v691
        %820 = vst [vmem:[%s446 + $0x1d8] sm:$0xff] %v692
        %821 = vst [vmem:[%s446 + $0x1e0] sm:$0xff] %v693
        %822 = vst [vmem:[%s446 + $0x1e8] sm:$0xff] %v694
        %823 = vst [vmem:[%s446 + $0x1f0] sm:$0xff] %v695
        %824 = vst [vmem:[%s446 + $0x1f8] sm:$0xff] %v696
        %825 = vst [vmem:[%s446 + $0x200] sm:$0xff] %v697
        %826 = vst [vmem:[%s446 + $0x208] sm:$0xff] %v698
        %827 = vst [vmem:[%s446 + $0x210] sm:$0xff] %v699
        %828 = vst [vmem:[%s446 + $0x218] sm:$0xff] %v700
        %829 = vst [vmem:[%s446 + $0x220] sm:$0xff] %v701
        %830 = vst [vmem:[%s446 + $0x228] sm:$0xff] %v702
        %831 = vst [vmem:[%s446 + $0x230] sm:$0xff] %v703
        %832 = vst [vmem:[%s446 + $0x238] sm:$0xff] %v704
        %833 = vst [vmem:[%s446 + $0x240] sm:$0xff] %v705
        %834 = vst [vmem:[%s446 + $0x248] sm:$0xff] %v706
        %835 = vst [vmem:[%s446 + $0x250] sm:$0xff] %v707
        %836 = vst [vmem:[%s446 + $0x258] sm:$0xff] %v708
        %837 = vst [vmem:[%s446 + $0x260] sm:$0xff] %v709
        %838 = vst [vmem:[%s446 + $0x268] sm:$0xff] %v710
        %839 = vst [vmem:[%s446 + $0x270] sm:$0xff] %v711
        %840 = vst [vmem:[%s446 + $0x278] sm:$0xff] %v712
        %841 = vst [vmem:[%s446 + $0x280] sm:$0xff] %v713
        %842 = vst [vmem:[%s446 + $0x288] sm:$0xff] %v714
        %843 = vst [vmem:[%s446 + $0x290] sm:$0xff] %v715
        %844 = vst [vmem:[%s446 + $0x298] sm:$0xff] %v716
        %845 = vst [vmem:[%s446 + $0x2a0] sm:$0xff] %v717
        %846 = vst [vmem:[%s446 + $0x2a8] sm:$0xff] %v718
        %847 = vst [vmem:[%s446 + $0x2b0] sm:$0xff] %v719
        %848 = vst [vmem:[%s446 + $0x2b8] sm:$0xff] %v720
        %849 = vst [vmem:[%s446 + $0x2c0] sm:$0xff] %v721
        %850 = vst [vmem:[%s446 + $0x2c8] sm:$0xff] %v722
        %851 = vst [vmem:[%s446 + $0x2d0] sm:$0xff] %v723
        %852 = vst [vmem:[%s446 + $0x2d8] sm:$0xff] %v724
        %853 = vst [vmem:[%s446 + $0x2e0] sm:$0xff] %v725
        %854 = vst [vmem:[%s446 + $0x2e8] sm:$0xff] %v726
        %855 = vst [vmem:[%s446 + $0x2f0] sm:$0xff] %v727
        %856 = vst [vmem:[%s446 + $0x2f8] sm:$0xff] %v728
        %857 = vst [vmem:[%s446 + $0x300] sm:$0xff] %v729
        %858 = vst [vmem:[%s446 + $0x308] sm:$0xff] %v730
        %859 = vst [vmem:[%s446 + $0x310] sm:$0xff] %v731
        %860 = vst [vmem:[%s446 + $0x318] sm:$0xff] %v732
        %861 = vst [vmem:[%s446 + $0x320] sm:$0xff] %v733
        %862 = vst [vmem:[%s446 + $0x328] sm:$0xff] %v734
        %863 = vst [vmem:[%s446 + $0x330] sm:$0xff] %v735
        %864 = vst [vmem:[%s446 + $0x338] sm:$0xff] %v736
        %865 = vst [vmem:[%s446 + $0x340] sm:$0xff] %v737
        %866 = vst [vmem:[%s446 + $0x348] sm:$0xff] %v738
        %867 = vst [vmem:[%s446 + $0x350] sm:$0xff] %v739
        %868 = vst [vmem:[%s446 + $0x358] sm:$0xff] %v740
        %869 = vst [vmem:[%s446 + $0x360] sm:$0xff] %v741
        %870 = vst [vmem:[%s446 + $0x368] sm:$0xff] %v742
        %871 = vst [vmem:[%s446 + $0x370] sm:$0xff] %v743
        %872 = vst [vmem:[%s446 + $0x378] sm:$0xff] %v744
        %873 = vst [vmem:[%s446 + $0x380] sm:$0xff] %v745
        %874 = vst [vmem:[%s446 + $0x388] sm:$0xff] %v746
        %875 = vst [vmem:[%s446 + $0x390] sm:$0xff] %v747
        %876 = vst [vmem:[%s446 + $0x398] sm:$0xff] %v748
        %877 = vst [vmem:[%s446 + $0x3a0] sm:$0xff] %v749
        %878 = vst [vmem:[%s446 + $0x3a8] sm:$0xff] %v750
        %879 = vst [vmem:[%s446 + $0x3b0] sm:$0xff] %v751
        %880 = vst [vmem:[%s446 + $0x3b8] sm:$0xff] %v752
        %881 = vst [vmem:[%s446 + $0x3c0] sm:$0xff] %v753
        %882 = vst [vmem:[%s446 + $0x3c8] sm:$0xff] %v754
        %883 = vst [vmem:[%s446 + $0x3d0] sm:$0xff] %v755
        %884 = vst [vmem:[%s446 + $0x3d8] sm:$0xff] %v756
        %885 = vst [vmem:[%s446 + $0x3e0] sm:$0xff] %v757
        %886 = vst [vmem:[%s446 + $0x3e8] sm:$0xff] %v758
        %887 = vst [vmem:[%s446 + $0x3f0] sm:$0xff] %v759
        %888 = vst [vmem:[%s446 + $0x3f8] sm:$0xff] %v760
        %s889 = sand.u32 %s89, 1
        %s890 = sand.u32 %s89, 1
        %s891 = smul.addr %s890, 1024
        %s892 = scalar_lea.vmem [#allocation3], %s891
        // Predicated region
        $region52: #{eca_forward.3} parent=46 // pred_check
          %p893 = pneg %p99
        $region53: #{eca_forward.3} parent=46 // pred_check_branch
          %895 = sbr.rel (%p893) target = $region55
        $region54: #{eca_forward.3} parent=46 // pred_region
          %s896 = smul.u32 8, %s17
          %s897 = smul.u32 16, %s18
          %s898 = smul.addr %s896, 32
          %s899 = sadd.s32 %s897, %s898
          %s900 = smul.addr %s899, 8
          %s901 = scalar_lea.vmem %s2, %s900
          // Predicated region
          $region56: #{eca_forward.3} parent=54 // pred_check
            _
          $region57: #{eca_forward.3} parent=54 // pred_check_branch
            %903 = sbr.rel (0) target = $region59
          $region58: #{eca_forward.3} parent=54 // pred_region
            // Predicated region
            $region60: #{eca_forward.3} parent=58 // pred_check
              _
            $region61: #{eca_forward.3} parent=58 // pred_check_branch
              %905 = sbr.rel (0) target = $region63
            $region62: #{eca_forward.3} parent=58 // pred_region
              loop: start=0, step=1, limit=1
              $region64: #{eca_forward.3} parent=62 // loop_pre_header
                _
              $region65: #{eca_forward.3} parent=62 // loop_header
                %s907 = sphi 0, %s911
                %p908 = scmp.ge.s32.totalorder %s907, 1
                %s912 = sphi %s892, %s892
                %s913 = sphi %s901, %s901
              $region66: #{eca_forward.3} parent=62 // loop_header_branch
                %910 = sbr.rel (%p908) target = $region70
              $region67: #{eca_forward.3} parent=62 // loop_body
                %v914 = vld [vmem:[%s912] sm:$0xff]
                %915 = vst [vmem:[%s913] sm:$0xff] %v914
                %v916 = vld [vmem:[%s912 + $0x8] sm:$0xff]
                %917 = vst [vmem:[%s913 + $0x8] sm:$0xff] %v916
                %v918 = vld [vmem:[%s912 + $0x10] sm:$0xff]
                %919 = vst [vmem:[%s913 + $0x10] sm:$0xff] %v918
                %v920 = vld [vmem:[%s912 + $0x18] sm:$0xff]
                %921 = vst [vmem:[%s913 + $0x18] sm:$0xff] %v920
                %v922 = vld [vmem:[%s912 + $0x20] sm:$0xff]
                %923 = vst [vmem:[%s913 + $0x20] sm:$0xff] %v922
                %v924 = vld [vmem:[%s912 + $0x28] sm:$0xff]
                %925 = vst [vmem:[%s913 + $0x28] sm:$0xff] %v924
                %v926 = vld [vmem:[%s912 + $0x30] sm:$0xff]
                %927 = vst [vmem:[%s913 + $0x30] sm:$0xff] %v926
                %v928 = vld [vmem:[%s912 + $0x38] sm:$0xff]
                %929 = vst [vmem:[%s913 + $0x38] sm:$0xff] %v928
                %v930 = vld [vmem:[%s912 + $0x40] sm:$0xff]
                %931 = vst [vmem:[%s913 + $0x40] sm:$0xff] %v930
                %v932 = vld [vmem:[%s912 + $0x48] sm:$0xff]
                %933 = vst [vmem:[%s913 + $0x48] sm:$0xff] %v932
                %v934 = vld [vmem:[%s912 + $0x50] sm:$0xff]
                %935 = vst [vmem:[%s913 + $0x50] sm:$0xff] %v934
                %v936 = vld [vmem:[%s912 + $0x58] sm:$0xff]
                %937 = vst [vmem:[%s913 + $0x58] sm:$0xff] %v936
                %v938 = vld [vmem:[%s912 + $0x60] sm:$0xff]
                %939 = vst [vmem:[%s913 + $0x60] sm:$0xff] %v938
                %v940 = vld [vmem:[%s912 + $0x68] sm:$0xff]
                %941 = vst [vmem:[%s913 + $0x68] sm:$0xff] %v940
                %v942 = vld [vmem:[%s912 + $0x70] sm:$0xff]
                %943 = vst [vmem:[%s913 + $0x70] sm:$0xff] %v942
                %v944 = vld [vmem:[%s912 + $0x78] sm:$0xff]
                %945 = vst [vmem:[%s913 + $0x78] sm:$0xff] %v944
                %v946 = vld [vmem:[%s912 + $0x80] sm:$0xff]
                %947 = vst [vmem:[%s913 + $0x100] sm:$0xff] %v946
                %v948 = vld [vmem:[%s912 + $0x88] sm:$0xff]
                %949 = vst [vmem:[%s913 + $0x108] sm:$0xff] %v948
                %v950 = vld [vmem:[%s912 + $0x90] sm:$0xff]
                %951 = vst [vmem:[%s913 + $0x110] sm:$0xff] %v950
                %v952 = vld [vmem:[%s912 + $0x98] sm:$0xff]
                %953 = vst [vmem:[%s913 + $0x118] sm:$0xff] %v952
                %v954 = vld [vmem:[%s912 + $0xa0] sm:$0xff]
                %955 = vst [vmem:[%s913 + $0x120] sm:$0xff] %v954
                %v956 = vld [vmem:[%s912 + $0xa8] sm:$0xff]
                %957 = vst [vmem:[%s913 + $0x128] sm:$0xff] %v956
                %v958 = vld [vmem:[%s912 + $0xb0] sm:$0xff]
                %959 = vst [vmem:[%s913 + $0x130] sm:$0xff] %v958
                %v960 = vld [vmem:[%s912 + $0xb8] sm:$0xff]
                %961 = vst [vmem:[%s913 + $0x138] sm:$0xff] %v960
                %v962 = vld [vmem:[%s912 + $0xc0] sm:$0xff]
                %963 = vst [vmem:[%s913 + $0x140] sm:$0xff] %v962
                %v964 = vld [vmem:[%s912 + $0xc8] sm:$0xff]
                %965 = vst [vmem:[%s913 + $0x148] sm:$0xff] %v964
                %v966 = vld [vmem:[%s912 + $0xd0] sm:$0xff]
                %967 = vst [vmem:[%s913 + $0x150] sm:$0xff] %v966
                %v968 = vld [vmem:[%s912 + $0xd8] sm:$0xff]
                %969 = vst [vmem:[%s913 + $0x158] sm:$0xff] %v968
                %v970 = vld [vmem:[%s912 + $0xe0] sm:$0xff]
                %971 = vst [vmem:[%s913 + $0x160] sm:$0xff] %v970
                %v972 = vld [vmem:[%s912 + $0xe8] sm:$0xff]
                %973 = vst [vmem:[%s913 + $0x168] sm:$0xff] %v972
                %v974 = vld [vmem:[%s912 + $0xf0] sm:$0xff]
                %975 = vst [vmem:[%s913 + $0x170] sm:$0xff] %v974
                %v976 = vld [vmem:[%s912 + $0xf8] sm:$0xff]
                %977 = vst [vmem:[%s913 + $0x178] sm:$0xff] %v976
                %v978 = vld [vmem:[%s912 + $0x100] sm:$0xff]
                %979 = vst [vmem:[%s913 + $0x200] sm:$0xff] %v978
                %v980 = vld [vmem:[%s912 + $0x108] sm:$0xff]
                %981 = vst [vmem:[%s913 + $0x208] sm:$0xff] %v980
                %v982 = vld [vmem:[%s912 + $0x110] sm:$0xff]
                %983 = vst [vmem:[%s913 + $0x210] sm:$0xff] %v982
                %v984 = vld [vmem:[%s912 + $0x118] sm:$0xff]
                %985 = vst [vmem:[%s913 + $0x218] sm:$0xff] %v984
                %v986 = vld [vmem:[%s912 + $0x120] sm:$0xff]
                %987 = vst [vmem:[%s913 + $0x220] sm:$0xff] %v986
                %v988 = vld [vmem:[%s912 + $0x128] sm:$0xff]
                %989 = vst [vmem:[%s913 + $0x228] sm:$0xff] %v988
                %v990 = vld [vmem:[%s912 + $0x130] sm:$0xff]
                %991 = vst [vmem:[%s913 + $0x230] sm:$0xff] %v990
                %v992 = vld [vmem:[%s912 + $0x138] sm:$0xff]
                %993 = vst [vmem:[%s913 + $0x238] sm:$0xff] %v992
                %v994 = vld [vmem:[%s912 + $0x140] sm:$0xff]
                %995 = vst [vmem:[%s913 + $0x240] sm:$0xff] %v994
                %v996 = vld [vmem:[%s912 + $0x148] sm:$0xff]
                %997 = vst [vmem:[%s913 + $0x248] sm:$0xff] %v996
                %v998 = vld [vmem:[%s912 + $0x150] sm:$0xff]
                %999 = vst [vmem:[%s913 + $0x250] sm:$0xff] %v998
                %v1000 = vld [vmem:[%s912 + $0x158] sm:$0xff]
                %1001 = vst [vmem:[%s913 + $0x258] sm:$0xff] %v1000
                %v1002 = vld [vmem:[%s912 + $0x160] sm:$0xff]
                %1003 = vst [vmem:[%s913 + $0x260] sm:$0xff] %v1002
                %v1004 = vld [vmem:[%s912 + $0x168] sm:$0xff]
                %1005 = vst [vmem:[%s913 + $0x268] sm:$0xff] %v1004
                %v1006 = vld [vmem:[%s912 + $0x170] sm:$0xff]
                %1007 = vst [vmem:[%s913 + $0x270] sm:$0xff] %v1006
                %v1008 = vld [vmem:[%s912 + $0x178] sm:$0xff]
                %1009 = vst [vmem:[%s913 + $0x278] sm:$0xff] %v1008
                %v1010 = vld [vmem:[%s912 + $0x180] sm:$0xff]
                %1011 = vst [vmem:[%s913 + $0x300] sm:$0xff] %v1010
                %v1012 = vld [vmem:[%s912 + $0x188] sm:$0xff]
                %1013 = vst [vmem:[%s913 + $0x308] sm:$0xff] %v1012
                %v1014 = vld [vmem:[%s912 + $0x190] sm:$0xff]
                %1015 = vst [vmem:[%s913 + $0x310] sm:$0xff] %v1014
                %v1016 = vld [vmem:[%s912 + $0x198] sm:$0xff]
                %1017 = vst [vmem:[%s913 + $0x318] sm:$0xff] %v1016
                %v1018 = vld [vmem:[%s912 + $0x1a0] sm:$0xff]
                %1019 = vst [vmem:[%s913 + $0x320] sm:$0xff] %v1018
                %v1020 = vld [vmem:[%s912 + $0x1a8] sm:$0xff]
                %1021 = vst [vmem:[%s913 + $0x328] sm:$0xff] %v1020
                %v1022 = vld [vmem:[%s912 + $0x1b0] sm:$0xff]
                %1023 = vst [vmem:[%s913 + $0x330] sm:$0xff] %v1022
                %v1024 = vld [vmem:[%s912 + $0x1b8] sm:$0xff]
                %1025 = vst [vmem:[%s913 + $0x338] sm:$0xff] %v1024
                %v1026 = vld [vmem:[%s912 + $0x1c0] sm:$0xff]
                %1027 = vst [vmem:[%s913 + $0x340] sm:$0xff] %v1026
                %v1028 = vld [vmem:[%s912 + $0x1c8] sm:$0xff]
                %1029 = vst [vmem:[%s913 + $0x348] sm:$0xff] %v1028
                %v1030 = vld [vmem:[%s912 + $0x1d0] sm:$0xff]
                %1031 = vst [vmem:[%s913 + $0x350] sm:$0xff] %v1030
                %v1032 = vld [vmem:[%s912 + $0x1d8] sm:$0xff]
                %1033 = vst [vmem:[%s913 + $0x358] sm:$0xff] %v1032
                %v1034 = vld [vmem:[%s912 + $0x1e0] sm:$0xff]
                %1035 = vst [vmem:[%s913 + $0x360] sm:$0xff] %v1034
                %v1036 = vld [vmem:[%s912 + $0x1e8] sm:$0xff]
                %1037 = vst [vmem:[%s913 + $0x368] sm:$0xff] %v1036
                %v1038 = vld [vmem:[%s912 + $0x1f0] sm:$0xff]
                %1039 = vst [vmem:[%s913 + $0x370] sm:$0xff] %v1038
                %v1040 = vld [vmem:[%s912 + $0x1f8] sm:$0xff]
                %1041 = vst [vmem:[%s913 + $0x378] sm:$0xff] %v1040
                %v1042 = vld [vmem:[%s912 + $0x200] sm:$0xff]
                %1043 = vst [vmem:[%s913 + $0x400] sm:$0xff] %v1042
                %v1044 = vld [vmem:[%s912 + $0x208] sm:$0xff]
                %1045 = vst [vmem:[%s913 + $0x408] sm:$0xff] %v1044
                %v1046 = vld [vmem:[%s912 + $0x210] sm:$0xff]
                %1047 = vst [vmem:[%s913 + $0x410] sm:$0xff] %v1046
                %v1048 = vld [vmem:[%s912 + $0x218] sm:$0xff]
                %1049 = vst [vmem:[%s913 + $0x418] sm:$0xff] %v1048
                %v1050 = vld [vmem:[%s912 + $0x220] sm:$0xff]
                %1051 = vst [vmem:[%s913 + $0x420] sm:$0xff] %v1050
                %v1052 = vld [vmem:[%s912 + $0x228] sm:$0xff]
                %1053 = vst [vmem:[%s913 + $0x428] sm:$0xff] %v1052
                %v1054 = vld [vmem:[%s912 + $0x230] sm:$0xff]
                %1055 = vst [vmem:[%s913 + $0x430] sm:$0xff] %v1054
                %v1056 = vld [vmem:[%s912 + $0x238] sm:$0xff]
                %1057 = vst [vmem:[%s913 + $0x438] sm:$0xff] %v1056
                %v1058 = vld [vmem:[%s912 + $0x240] sm:$0xff]
                %1059 = vst [vmem:[%s913 + $0x440] sm:$0xff] %v1058
                %v1060 = vld [vmem:[%s912 + $0x248] sm:$0xff]
                %1061 = vst [vmem:[%s913 + $0x448] sm:$0xff] %v1060
                %v1062 = vld [vmem:[%s912 + $0x250] sm:$0xff]
                %1063 = vst [vmem:[%s913 + $0x450] sm:$0xff] %v1062
                %v1064 = vld [vmem:[%s912 + $0x258] sm:$0xff]
                %1065 = vst [vmem:[%s913 + $0x458] sm:$0xff] %v1064
                %v1066 = vld [vmem:[%s912 + $0x260] sm:$0xff]
                %1067 = vst [vmem:[%s913 + $0x460] sm:$0xff] %v1066
                %v1068 = vld [vmem:[%s912 + $0x268] sm:$0xff]
                %1069 = vst [vmem:[%s913 + $0x468] sm:$0xff] %v1068
                %v1070 = vld [vmem:[%s912 + $0x270] sm:$0xff]
                %1071 = vst [vmem:[%s913 + $0x470] sm:$0xff] %v1070
                %v1072 = vld [vmem:[%s912 + $0x278] sm:$0xff]
                %1073 = vst [vmem:[%s913 + $0x478] sm:$0xff] %v1072
                %v1074 = vld [vmem:[%s912 + $0x280] sm:$0xff]
                %1075 = vst [vmem:[%s913 + $0x500] sm:$0xff] %v1074
                %v1076 = vld [vmem:[%s912 + $0x288] sm:$0xff]
                %1077 = vst [vmem:[%s913 + $0x508] sm:$0xff] %v1076
                %v1078 = vld [vmem:[%s912 + $0x290] sm:$0xff]
                %1079 = vst [vmem:[%s913 + $0x510] sm:$0xff] %v1078
                %v1080 = vld [vmem:[%s912 + $0x298] sm:$0xff]
                %1081 = vst [vmem:[%s913 + $0x518] sm:$0xff] %v1080
                %v1082 = vld [vmem:[%s912 + $0x2a0] sm:$0xff]
                %1083 = vst [vmem:[%s913 + $0x520] sm:$0xff] %v1082
                %v1084 = vld [vmem:[%s912 + $0x2a8] sm:$0xff]
                %1085 = vst [vmem:[%s913 + $0x528] sm:$0xff] %v1084
                %v1086 = vld [vmem:[%s912 + $0x2b0] sm:$0xff]
                %1087 = vst [vmem:[%s913 + $0x530] sm:$0xff] %v1086
                %v1088 = vld [vmem:[%s912 + $0x2b8] sm:$0xff]
                %1089 = vst [vmem:[%s913 + $0x538] sm:$0xff] %v1088
                %v1090 = vld [vmem:[%s912 + $0x2c0] sm:$0xff]
                %1091 = vst [vmem:[%s913 + $0x540] sm:$0xff] %v1090
                %v1092 = vld [vmem:[%s912 + $0x2c8] sm:$0xff]
                %1093 = vst [vmem:[%s913 + $0x548] sm:$0xff] %v1092
                %v1094 = vld [vmem:[%s912 + $0x2d0] sm:$0xff]
                %1095 = vst [vmem:[%s913 + $0x550] sm:$0xff] %v1094
                %v1096 = vld [vmem:[%s912 + $0x2d8] sm:$0xff]
                %1097 = vst [vmem:[%s913 + $0x558] sm:$0xff] %v1096
                %v1098 = vld [vmem:[%s912 + $0x2e0] sm:$0xff]
                %1099 = vst [vmem:[%s913 + $0x560] sm:$0xff] %v1098
                %v1100 = vld [vmem:[%s912 + $0x2e8] sm:$0xff]
                %1101 = vst [vmem:[%s913 + $0x568] sm:$0xff] %v1100
                %v1102 = vld [vmem:[%s912 + $0x2f0] sm:$0xff]
                %1103 = vst [vmem:[%s913 + $0x570] sm:$0xff] %v1102
                %v1104 = vld [vmem:[%s912 + $0x2f8] sm:$0xff]
                %1105 = vst [vmem:[%s913 + $0x578] sm:$0xff] %v1104
                %v1106 = vld [vmem:[%s912 + $0x300] sm:$0xff]
                %1107 = vst [vmem:[%s913 + $0x600] sm:$0xff] %v1106
                %v1108 = vld [vmem:[%s912 + $0x308] sm:$0xff]
                %1109 = vst [vmem:[%s913 + $0x608] sm:$0xff] %v1108
                %v1110 = vld [vmem:[%s912 + $0x310] sm:$0xff]
                %1111 = vst [vmem:[%s913 + $0x610] sm:$0xff] %v1110
                %v1112 = vld [vmem:[%s912 + $0x318] sm:$0xff]
                %1113 = vst [vmem:[%s913 + $0x618] sm:$0xff] %v1112
                %v1114 = vld [vmem:[%s912 + $0x320] sm:$0xff]
                %1115 = vst [vmem:[%s913 + $0x620] sm:$0xff] %v1114
                %v1116 = vld [vmem:[%s912 + $0x328] sm:$0xff]
                %1117 = vst [vmem:[%s913 + $0x628] sm:$0xff] %v1116
                %v1118 = vld [vmem:[%s912 + $0x330] sm:$0xff]
                %1119 = vst [vmem:[%s913 + $0x630] sm:$0xff] %v1118
                %v1120 = vld [vmem:[%s912 + $0x338] sm:$0xff]
                %1121 = vst [vmem:[%s913 + $0x638] sm:$0xff] %v1120
                %v1122 = vld [vmem:[%s912 + $0x340] sm:$0xff]
                %1123 = vst [vmem:[%s913 + $0x640] sm:$0xff] %v1122
                %v1124 = vld [vmem:[%s912 + $0x348] sm:$0xff]
                %1125 = vst [vmem:[%s913 + $0x648] sm:$0xff] %v1124
                %v1126 = vld [vmem:[%s912 + $0x350] sm:$0xff]
                %1127 = vst [vmem:[%s913 + $0x650] sm:$0xff] %v1126
                %v1128 = vld [vmem:[%s912 + $0x358] sm:$0xff]
                %1129 = vst [vmem:[%s913 + $0x658] sm:$0xff] %v1128
                %v1130 = vld [vmem:[%s912 + $0x360] sm:$0xff]
                %1131 = vst [vmem:[%s913 + $0x660] sm:$0xff] %v1130
                %v1132 = vld [vmem:[%s912 + $0x368] sm:$0xff]
                %1133 = vst [vmem:[%s913 + $0x668] sm:$0xff] %v1132
                %v1134 = vld [vmem:[%s912 + $0x370] sm:$0xff]
                %1135 = vst [vmem:[%s913 + $0x670] sm:$0xff] %v1134
                %v1136 = vld [vmem:[%s912 + $0x378] sm:$0xff]
                %1137 = vst [vmem:[%s913 + $0x678] sm:$0xff] %v1136
                %v1138 = vld [vmem:[%s912 + $0x380] sm:$0xff]
                %1139 = vst [vmem:[%s913 + $0x700] sm:$0xff] %v1138
                %v1140 = vld [vmem:[%s912 + $0x388] sm:$0xff]
                %1141 = vst [vmem:[%s913 + $0x708] sm:$0xff] %v1140
                %v1142 = vld [vmem:[%s912 + $0x390] sm:$0xff]
                %1143 = vst [vmem:[%s913 + $0x710] sm:$0xff] %v1142
                %v1144 = vld [vmem:[%s912 + $0x398] sm:$0xff]
                %1145 = vst [vmem:[%s913 + $0x718] sm:$0xff] %v1144
                %v1146 = vld [vmem:[%s912 + $0x3a0] sm:$0xff]
                %1147 = vst [vmem:[%s913 + $0x720] sm:$0xff] %v1146
                %v1148 = vld [vmem:[%s912 + $0x3a8] sm:$0xff]
                %1149 = vst [vmem:[%s913 + $0x728] sm:$0xff] %v1148
                %v1150 = vld [vmem:[%s912 + $0x3b0] sm:$0xff]
                %1151 = vst [vmem:[%s913 + $0x730] sm:$0xff] %v1150
                %v1152 = vld [vmem:[%s912 + $0x3b8] sm:$0xff]
                %1153 = vst [vmem:[%s913 + $0x738] sm:$0xff] %v1152
                %v1154 = vld [vmem:[%s912 + $0x3c0] sm:$0xff]
                %1155 = vst [vmem:[%s913 + $0x740] sm:$0xff] %v1154
                %v1156 = vld [vmem:[%s912 + $0x3c8] sm:$0xff]
                %1157 = vst [vmem:[%s913 + $0x748] sm:$0xff] %v1156
                %v1158 = vld [vmem:[%s912 + $0x3d0] sm:$0xff]
                %1159 = vst [vmem:[%s913 + $0x750] sm:$0xff] %v1158
                %v1160 = vld [vmem:[%s912 + $0x3d8] sm:$0xff]
                %1161 = vst [vmem:[%s913 + $0x758] sm:$0xff] %v1160
                %v1162 = vld [vmem:[%s912 + $0x3e0] sm:$0xff]
                %1163 = vst [vmem:[%s913 + $0x760] sm:$0xff] %v1162
                %v1164 = vld [vmem:[%s912 + $0x3e8] sm:$0xff]
                %1165 = vst [vmem:[%s913 + $0x768] sm:$0xff] %v1164
                %v1166 = vld [vmem:[%s912 + $0x3f0] sm:$0xff]
                %1167 = vst [vmem:[%s913 + $0x770] sm:$0xff] %v1166
                %v1168 = vld [vmem:[%s912 + $0x3f8] sm:$0xff]
                %1169 = vst [vmem:[%s913 + $0x778] sm:$0xff] %v1168
              $region68: #{eca_forward.3} parent=62 // loop_footer
                %s911 = sadd.s32 1, %s907
              $region69: #{eca_forward.3} parent=62 // loop_footer_branch
                %906 = sbr.rel target = $region65
              $region70: #{eca_forward.3} parent=62 // loop_exit
                _
            $region63: #{eca_forward.3} parent=58 // pred_fallthru
              _
            // Predicated region
            $region71: #{eca_forward.3} parent=58 // pred_check
              _
            $region72: #{eca_forward.3} parent=58 // pred_check_branch
              %1171 = sbr.rel target = $region74
            $region73: #{eca_forward.3} parent=58 // pred_region
              _
            $region74: #{eca_forward.3} parent=58 // pred_fallthru
              _
          $region59: #{eca_forward.3} parent=54 // pred_fallthru
            _
          %1172 = vnop
        $region55: #{eca_forward.3} parent=46 // pred_fallthru
          _
      $region47: #{eca_forward.3} parent=5 // pred_fallthru
        _
      %p1173 = scmp.le.s32.totalorder 2, %s8
      // Predicated region
      $region75: #{eca_forward.3} parent=5 // pred_check
        %p1174 = pneg %p1173
      $region76: #{eca_forward.3} parent=5 // pred_check_branch
        %1176 = sbr.rel (%p1174) target = $region78
      $region77: #{eca_forward.3} parent=5 // pred_region
        %s1177 = ssub.s32 %s8, 2
        // Predicated region
        $region79: #{eca_forward.3} parent=77 // pred_check
          %p1178 = pneg %p105
        $region80: #{eca_forward.3} parent=77 // pred_check_branch
          %1180 = sbr.rel (%p1178) target = $region82
        $region81: #{eca_forward.3} parent=77 // pred_region
          %s1181 = sand.u32 %s90, 1
          %s1182 = sand.u32 %s90, 1
          %s1183 = smul.addr %s1182, 1024
          %s1184 = scalar_lea.vmem [#allocation3], %s1183
        $region82: #{eca_forward.3} parent=77 // pred_fallthru
          _
      $region78: #{eca_forward.3} parent=5 // pred_fallthru
        _
    $region6: #{eca_forward.3} parent=1 // loop_footer
      %s12 = sadd.s32 1, %s8
    $region7: #{eca_forward.3} parent=1 // loop_footer_branch
      %7 = sbr.rel target = $region3
    $region8: #{eca_forward.3} parent=1 // loop_exit
      _

</llo_original>
